<compile_context>
chip_gen: v7x
topology: tpu7x:2x2x1
jax: 0.10.0
libtpu: 0.0.40
codegen_flags: <defaults>
</compile_context>

<pallas_src>
import jax
import jax.numpy as jnp
from jax import lax
from jax.experimental import pallas as pl
from jax.experimental.pallas import tpu as pltpu

# ----------------------------- model sizes ---------------------------------
B = 8          # batch_size
W = 8          # window (sequence length)
N = 8          # num_size (features per step)
H = 32         # hidden_size
C = 16         # code_size

PAD = 8                    # bias/zero pad block -> 8-aligned contraction dims
KE = N + H + PAD           # 48  encoder augmented contraction
KD = 2 * H + PAD           # 72  decoder augmented contraction

# packed parameter-slab row offsets (all multiples of 8)
R_WE = 0                   # (KE, H)     encoder augmented weights
R_WD = R_WE + KE           # (KD, H)     decoder augmented weights
R_WC = R_WD + KD           # (H,  C)     code projection
R_BC = R_WC + H            # (B,  C)     code bias, pre-broadcast to B rows
R_WO = R_BC + B            # (W*H, W*N)  block-diagonal output projection
R_BO = R_WO + W * H        # (B,  W*N)   output bias, tiled + broadcast
SLAB_ROWS = R_BO + B       # 424
SLAB_COLS = W * N          # 64


# ------------------------------ Pallas kernel ------------------------------
def acled_kernel(x_ref,        # [B, W*N]       inputs, time along lanes
                 slab_ref,     # [424, 64]      packed parameters
                 out_ref,      # [B, W*N]       reconstruction
                 code_ref):    # [B, C]         code
    f32 = jnp.float32

    # ---- static slices of the packed parameter slab (hoisted, loaded once) ----
    w_e   = slab_ref[R_WE:R_WE + KE, 0:H]            # (48, 32)
    w_d   = slab_ref[R_WD:R_WD + KD, 0:H]            # (72, 32)
    wcode = slab_ref[R_WC:R_WC + H, 0:C]             # (32, 16)
    bcode = slab_ref[R_BC:R_BC + B, 0:C]             # (8, 16)
    w_out = slab_ref[R_WO:R_WO + W * H, 0:W * N]     # (256, 64)
    b_out = slab_ref[R_BO:R_BO + B, 0:W * N]         # (8, 64)

    x_all = x_ref[...]                               # (8, 64)

    # [1, 0, 0, ..., 0] pad block: absorbs the biases into the augmented dots
    lane = lax.broadcasted_iota(jnp.int32, (B, PAD), 1)
    one_pad = (lane == 0).astype(f32)                # (8, 8)

    # ---- fused, fully unrolled encoder + decoder recurrence ----
    # one augmented dot per chain per step; h and d chains interleave on MXU/EUP
    h = jnp.zeros((B, H), f32)
    d = jnp.zeros((B, H), f32)
    d_list = []
    for t in range(W):                               # W is a compile-time constant
        x_t = x_all[:, t * N:(t + 1) * N]            # static lane slice (8, 8)
        h = jnp.tanh(jnp.dot(jnp.concatenate([x_t, h, one_pad], axis=1), w_e,
                             preferred_element_type=f32))
        d = jnp.tanh(jnp.dot(jnp.concatenate([h, d, one_pad], axis=1), w_d,
                             preferred_element_type=f32))
        d_list.append(d)                             # stays in vregs, no scratch

    # ---- code = final encoder hidden @ Wcode + bcode ----
    code_ref[...] = jnp.dot(h, wcode, preferred_element_type=f32) + bcode

    # ---- output projection: ONE dot against the block-diagonal W_out ----
    d_cat = jnp.concatenate(d_list, axis=1)          # (8, 256)
    out_ref[...] = (jnp.dot(d_cat, w_out, preferred_element_type=f32) + b_out)


# ------------------------------ param packing -------------------------------
def pack_params(params):
    """Pack the 10 small parameter arrays into one aligned f32 slab."""
    (wih_e, whh_e, b_e, wcode, bcode, wih_d, whh_d, b_d, wout, bout) = params
    f32 = jnp.float32
    zpad = jnp.zeros((PAD - 1, H), f32)

    w_e_aug = jnp.concatenate([wih_e, whh_e, b_e, zpad], axis=0)   # (48, 32)
    w_d_aug = jnp.concatenate([wih_d, whh_d, b_d, zpad], axis=0)   # (72, 32)
    wout_bd = jnp.kron(jnp.eye(W, dtype=f32), wout)                # (256, 64)
    bcode_b = jnp.broadcast_to(bcode, (B, C))                      # (8, 16)
    bout_b = jnp.broadcast_to(jnp.tile(bout, (1, W)), (B, W * N))  # (8, 64)

    slab = jnp.zeros((SLAB_ROWS, SLAB_COLS), f32)
    slab = slab.at[R_WE:R_WE + KE, 0:H].set(w_e_aug)
    slab = slab.at[R_WD:R_WD + KD, 0:H].set(w_d_aug)
    slab = slab.at[R_WC:R_WC + H, 0:C].set(wcode)
    slab = slab.at[R_BC:R_BC + B, 0:C].set(bcode_b)
    slab = slab.at[R_WO:R_WO + W * H, 0:W * N].set(wout_bd)
    slab = slab.at[R_BO:R_BO + B, 0:W * N].set(bout_b)
    return slab


# ------------------------------ wrapper -------------------------------------
def acled_forward(x, slab):
    """x: [B, W, N] float32, slab: packed params -> (output [B, W, N], code [B, C])."""
    x2d = x.reshape(B, W * N)                        # free reshape, no transpose
    vmem = pltpu.MemorySpace.VMEM

    out2d, code = pl.pallas_call(
        acled_kernel,
        out_shape=(
            jax.ShapeDtypeStruct((B, W * N), jnp.float32),
            jax.ShapeDtypeStruct((B, C), jnp.float32),
        ),
        in_specs=[pl.BlockSpec(memory_space=vmem),
                  pl.BlockSpec(memory_space=vmem)],
        out_specs=(
            pl.BlockSpec(memory_space=vmem),
            pl.BlockSpec(memory_space=vmem),
        ),
        cost_estimate=pl.CostEstimate(
            flops=761_856, transcendentals=4_096, bytes_accessed=113_152),
    )(x2d, slab)

    return out2d.reshape(B, W, N), code              # free reshape


# ------------------------------ reference -----------------------------------
def acled_reference(x, params):
    (wih_e, whh_e, b_e, wcode, bcode, wih_d, whh_d, b_d, wout, bout) = params
    x_t = jnp.transpose(x, (1, 0, 2))   # [W, B, N]

    def enc_step(h, xt):
        h = jnp.tanh(xt @ wih_e + h @ whh_e + b_e)
        return h, h

    h_last, enc_seq = lax.scan(enc_step, jnp.zeros((B, H), jnp.float32), x_t)
    code = h_last @ wcode + bcode

    def dec_step(d, et):
        d = jnp.tanh(et @ wih_d + d @ whh_d + b_d)
        return d, d @ wout + bout

    _, out_seq = lax.scan(dec_step, jnp.zeros((B, H), jnp.float32), enc_seq)
    return jnp.transpose(out_seq, (1, 0, 2)), code


# ------------------------------ params --------------------------------------
def init_params(key):
    ks = jax.random.split(key, 10)

    def mat(k, shape, fan_in):
        return jax.random.normal(k, shape, jnp.float32) / jnp.sqrt(fan_in)

    wih_e = mat(ks[0], (N, H), N)
    whh_e = mat(ks[1], (H, H), H)
    b_e   = mat(ks[2], (1, H), H)
    wcode = mat(ks[3], (H, C), H)
    bcode = mat(ks[4], (1, C), H)
    wih_d = mat(ks[5], (H, H), H)
    whh_d = mat(ks[6], (H, H), H)
    b_d   = mat(ks[7], (1, H), H)
    wout  = mat(ks[8], (H, N), H)
    bout  = mat(ks[9], (1, N), H)
    return (wih_e, whh_e, b_e, wcode, bcode, wih_d, whh_d, b_d, wout, bout)


if __name__ == "__main__":
    key = jax.random.PRNGKey(0)
    k_x, k_p = jax.random.split(key)
    x = jax.random.normal(k_x, (B, W, N), jnp.float32)
    params = init_params(k_p)

    # pack parameters once, outside the per-call path
    slab = jax.block_until_ready(pack_params(params))

    out, code = jax.jit(acled_forward)(x, slab)
    jax.block_until_ready((out, code))

    ref_out, ref_code = acled_reference(x, params)
    assert out.shape == (B, W, N) and code.shape == (B, C)
    assert jnp.allclose(out, ref_out, rtol=1e-4, atol=1e-4)
    assert jnp.allclose(code, ref_code, rtol=1e-4, atol=1e-4)

    print("KERNEL_OK")
</pallas_src>

<mosaic_0001>
module attributes {stable_mosaic.version = 11 : i64} {
  func.func @acled_kernel(%arg0: memref<8x64xf32, #tpu.memory_space<vmem>>, %arg1: memref<424x64xf32, #tpu.memory_space<vmem>>, %arg2: memref<8x64xf32, #tpu.memory_space<vmem>>, %arg3: memref<8x16xf32, #tpu.memory_space<vmem>>) attributes {dimension_semantics = [], scalar_prefetch = 0 : i64, scratch_operands = 0 : i64, tpu.core_type = #tpu.core_type<tc>} {
    %c0 = arith.constant 0 : index
    %c0_0 = arith.constant 0 : index
    %0 = vector.load %arg1[%c0, %c0_0] : memref<424x64xf32, #tpu.memory_space<vmem>>, vector<48x32xf32>
    %c48 = arith.constant 48 : index
    %c0_1 = arith.constant 0 : index
    %1 = vector.load %arg1[%c48, %c0_1] : memref<424x64xf32, #tpu.memory_space<vmem>>, vector<72x32xf32>
    %c120 = arith.constant 120 : index
    %c0_2 = arith.constant 0 : index
    %2 = vector.load %arg1[%c120, %c0_2] : memref<424x64xf32, #tpu.memory_space<vmem>>, vector<32x16xf32>
    %c152 = arith.constant 152 : index
    %c0_3 = arith.constant 0 : index
    %3 = vector.load %arg1[%c152, %c0_3] : memref<424x64xf32, #tpu.memory_space<vmem>>, vector<8x16xf32>
    %c160 = arith.constant 160 : index
    %c0_4 = arith.constant 0 : index
    %4 = vector.load %arg1[%c160, %c0_4] : memref<424x64xf32, #tpu.memory_space<vmem>>, vector<256x64xf32>
    %c416 = arith.constant 416 : index
    %c0_5 = arith.constant 0 : index
    %5 = vector.load %arg1[%c416, %c0_5] : memref<424x64xf32, #tpu.memory_space<vmem>>, vector<8x64xf32>
    %c0_6 = arith.constant 0 : index
    %c0_7 = arith.constant 0 : index
    %6 = vector.load %arg0[%c0_6, %c0_7] : memref<8x64xf32, #tpu.memory_space<vmem>>, vector<8x64xf32>
    %7 = tpu.iota {dimensions = array<i32: 1>} : vector<8x8xi32>
    %c0_i32 = arith.constant 0 : i32
    %8 = vector.broadcast %c0_i32 : i32 to vector<8x8xi32>
    %9 = arith.cmpi eq, %7, %8 : vector<8x8xi32>
    %10 = arith.extui %9 : vector<8x8xi1> to vector<8x8xi32>
    %11 = arith.sitofp %10 : vector<8x8xi32> to vector<8x8xf32>
    %cst = arith.constant 0.000000e+00 : f32
    %12 = vector.broadcast %cst : f32 to vector<8x32xf32>
    %cst_8 = arith.constant 0.000000e+00 : f32
    %13 = vector.broadcast %cst_8 : f32 to vector<8x32xf32>
    %14 = vector.extract_strided_slice %6 {offsets = [0, 0], sizes = [8, 8], strides = [1, 1]} : vector<8x64xf32> to vector<8x8xf32>
    %15 = tpu.concatenate %14, %12, %11 in 1 : vector<8x8xf32>, vector<8x32xf32>, vector<8x8xf32> -> vector<8x48xf32>
    %cst_9 = arith.constant dense<0.000000e+00> : vector<8x32xf32>
    %16 = tpu.matmul %15, %0, %cst_9 {dimension_numbers = #tpu.dot_dimension_numbers<[1], [0], [0], [1], [0, 0, 1, 1], [], []>} : vector<8x48xf32>, vector<48x32xf32>, vector<8x32xf32> -> vector<8x32xf32>
    %17 = math.tanh %16 : vector<8x32xf32>
    %18 = tpu.concatenate %17, %13, %11 in 1 : vector<8x32xf32>, vector<8x32xf32>, vector<8x8xf32> -> vector<8x72xf32>
    %cst_10 = arith.constant dense<0.000000e+00> : vector<8x32xf32>
    %19 = tpu.matmul %18, %1, %cst_10 {dimension_numbers = #tpu.dot_dimension_numbers<[1], [0], [0], [1], [0, 0, 1, 1], [], []>} : vector<8x72xf32>, vector<72x32xf32>, vector<8x32xf32> -> vector<8x32xf32>
    %20 = math.tanh %19 : vector<8x32xf32>
    %21 = vector.extract_strided_slice %6 {offsets = [0, 8], sizes = [8, 8], strides = [1, 1]} : vector<8x64xf32> to vector<8x8xf32>
    %22 = tpu.concatenate %21, %17, %11 in 1 : vector<8x8xf32>, vector<8x32xf32>, vector<8x8xf32> -> vector<8x48xf32>
    %cst_11 = arith.constant dense<0.000000e+00> : vector<8x32xf32>
    %23 = tpu.matmul %22, %0, %cst_11 {dimension_numbers = #tpu.dot_dimension_numbers<[1], [0], [0], [1], [0, 0, 1, 1], [], []>} : vector<8x48xf32>, vector<48x32xf32>, vector<8x32xf32> -> vector<8x32xf32>
    %24 = math.tanh %23 : vector<8x32xf32>
    %25 = tpu.concatenate %24, %20, %11 in 1 : vector<8x32xf32>, vector<8x32xf32>, vector<8x8xf32> -> vector<8x72xf32>
    %cst_12 = arith.constant dense<0.000000e+00> : vector<8x32xf32>
    %26 = tpu.matmul %25, %1, %cst_12 {dimension_numbers = #tpu.dot_dimension_numbers<[1], [0], [0], [1], [0, 0, 1, 1], [], []>} : vector<8x72xf32>, vector<72x32xf32>, vector<8x32xf32> -> vector<8x32xf32>
    %27 = math.tanh %26 : vector<8x32xf32>
    %28 = vector.extract_strided_slice %6 {offsets = [0, 16], sizes = [8, 8], strides = [1, 1]} : vector<8x64xf32> to vector<8x8xf32>
    %29 = tpu.concatenate %28, %24, %11 in 1 : vector<8x8xf32>, vector<8x32xf32>, vector<8x8xf32> -> vector<8x48xf32>
    %cst_13 = arith.constant dense<0.000000e+00> : vector<8x32xf32>
    %30 = tpu.matmul %29, %0, %cst_13 {dimension_numbers = #tpu.dot_dimension_numbers<[1], [0], [0], [1], [0, 0, 1, 1], [], []>} : vector<8x48xf32>, vector<48x32xf32>, vector<8x32xf32> -> vector<8x32xf32>
    %31 = math.tanh %30 : vector<8x32xf32>
    %32 = tpu.concatenate %31, %27, %11 in 1 : vector<8x32xf32>, vector<8x32xf32>, vector<8x8xf32> -> vector<8x72xf32>
    %cst_14 = arith.constant dense<0.000000e+00> : vector<8x32xf32>
    %33 = tpu.matmul %32, %1, %cst_14 {dimension_numbers = #tpu.dot_dimension_numbers<[1], [0], [0], [1], [0, 0, 1, 1], [], []>} : vector<8x72xf32>, vector<72x32xf32>, vector<8x32xf32> -> vector<8x32xf32>
    %34 = math.tanh %33 : vector<8x32xf32>
    %35 = vector.extract_strided_slice %6 {offsets = [0, 24], sizes = [8, 8], strides = [1, 1]} : vector<8x64xf32> to vector<8x8xf32>
    %36 = tpu.concatenate %35, %31, %11 in 1 : vector<8x8xf32>, vector<8x32xf32>, vector<8x8xf32> -> vector<8x48xf32>
    %cst_15 = arith.constant dense<0.000000e+00> : vector<8x32xf32>
    %37 = tpu.matmul %36, %0, %cst_15 {dimension_numbers = #tpu.dot_dimension_numbers<[1], [0], [0], [1], [0, 0, 1, 1], [], []>} : vector<8x48xf32>, vector<48x32xf32>, vector<8x32xf32> -> vector<8x32xf32>
    %38 = math.tanh %37 : vector<8x32xf32>
    %39 = tpu.concatenate %38, %34, %11 in 1 : vector<8x32xf32>, vector<8x32xf32>, vector<8x8xf32> -> vector<8x72xf32>
    %cst_16 = arith.constant dense<0.000000e+00> : vector<8x32xf32>
    %40 = tpu.matmul %39, %1, %cst_16 {dimension_numbers = #tpu.dot_dimension_numbers<[1], [0], [0], [1], [0, 0, 1, 1], [], []>} : vector<8x72xf32>, vector<72x32xf32>, vector<8x32xf32> -> vector<8x32xf32>
    %41 = math.tanh %40 : vector<8x32xf32>
    %42 = vector.extract_strided_slice %6 {offsets = [0, 32], sizes = [8, 8], strides = [1, 1]} : vector<8x64xf32> to vector<8x8xf32>
    %43 = tpu.concatenate %42, %38, %11 in 1 : vector<8x8xf32>, vector<8x32xf32>, vector<8x8xf32> -> vector<8x48xf32>
    %cst_17 = arith.constant dense<0.000000e+00> : vector<8x32xf32>
    %44 = tpu.matmul %43, %0, %cst_17 {dimension_numbers = #tpu.dot_dimension_numbers<[1], [0], [0], [1], [0, 0, 1, 1], [], []>} : vector<8x48xf32>, vector<48x32xf32>, vector<8x32xf32> -> vector<8x32xf32>
    %45 = math.tanh %44 : vector<8x32xf32>
    %46 = tpu.concatenate %45, %41, %11 in 1 : vector<8x32xf32>, vector<8x32xf32>, vector<8x8xf32> -> vector<8x72xf32>
    %cst_18 = arith.constant dense<0.000000e+00> : vector<8x32xf32>
    %47 = tpu.matmul %46, %1, %cst_18 {dimension_numbers = #tpu.dot_dimension_numbers<[1], [0], [0], [1], [0, 0, 1, 1], [], []>} : vector<8x72xf32>, vector<72x32xf32>, vector<8x32xf32> -> vector<8x32xf32>
    %48 = math.tanh %47 : vector<8x32xf32>
    %49 = vector.extract_strided_slice %6 {offsets = [0, 40], sizes = [8, 8], strides = [1, 1]} : vector<8x64xf32> to vector<8x8xf32>
    %50 = tpu.concatenate %49, %45, %11 in 1 : vector<8x8xf32>, vector<8x32xf32>, vector<8x8xf32> -> vector<8x48xf32>
    %cst_19 = arith.constant dense<0.000000e+00> : vector<8x32xf32>
    %51 = tpu.matmul %50, %0, %cst_19 {dimension_numbers = #tpu.dot_dimension_numbers<[1], [0], [0], [1], [0, 0, 1, 1], [], []>} : vector<8x48xf32>, vector<48x32xf32>, vector<8x32xf32> -> vector<8x32xf32>
    %52 = math.tanh %51 : vector<8x32xf32>
    %53 = tpu.concatenate %52, %48, %11 in 1 : vector<8x32xf32>, vector<8x32xf32>, vector<8x8xf32> -> vector<8x72xf32>
    %cst_20 = arith.constant dense<0.000000e+00> : vector<8x32xf32>
    %54 = tpu.matmul %53, %1, %cst_20 {dimension_numbers = #tpu.dot_dimension_numbers<[1], [0], [0], [1], [0, 0, 1, 1], [], []>} : vector<8x72xf32>, vector<72x32xf32>, vector<8x32xf32> -> vector<8x32xf32>
    %55 = math.tanh %54 : vector<8x32xf32>
    %56 = vector.extract_strided_slice %6 {offsets = [0, 48], sizes = [8, 8], strides = [1, 1]} : vector<8x64xf32> to vector<8x8xf32>
    %57 = tpu.concatenate %56, %52, %11 in 1 : vector<8x8xf32>, vector<8x32xf32>, vector<8x8xf32> -> vector<8x48xf32>
    %cst_21 = arith.constant dense<0.000000e+00> : vector<8x32xf32>
    %58 = tpu.matmul %57, %0, %cst_21 {dimension_numbers = #tpu.dot_dimension_numbers<[1], [0], [0], [1], [0, 0, 1, 1], [], []>} : vector<8x48xf32>, vector<48x32xf32>, vector<8x32xf32> -> vector<8x32xf32>
    %59 = math.tanh %58 : vector<8x32xf32>
    %60 = tpu.concatenate %59, %55, %11 in 1 : vector<8x32xf32>, vector<8x32xf32>, vector<8x8xf32> -> vector<8x72xf32>
    %cst_22 = arith.constant dense<0.000000e+00> : vector<8x32xf32>
    %61 = tpu.matmul %60, %1, %cst_22 {dimension_numbers = #tpu.dot_dimension_numbers<[1], [0], [0], [1], [0, 0, 1, 1], [], []>} : vector<8x72xf32>, vector<72x32xf32>, vector<8x32xf32> -> vector<8x32xf32>
    %62 = math.tanh %61 : vector<8x32xf32>
    %63 = vector.extract_strided_slice %6 {offsets = [0, 56], sizes = [8, 8], strides = [1, 1]} : vector<8x64xf32> to vector<8x8xf32>
    %64 = tpu.concatenate %63, %59, %11 in 1 : vector<8x8xf32>, vector<8x32xf32>, vector<8x8xf32> -> vector<8x48xf32>
    %cst_23 = arith.constant dense<0.000000e+00> : vector<8x32xf32>
    %65 = tpu.matmul %64, %0, %cst_23 {dimension_numbers = #tpu.dot_dimension_numbers<[1], [0], [0], [1], [0, 0, 1, 1], [], []>} : vector<8x48xf32>, vector<48x32xf32>, vector<8x32xf32> -> vector<8x32xf32>
    %66 = math.tanh %65 : vector<8x32xf32>
    %67 = tpu.concatenate %66, %62, %11 in 1 : vector<8x32xf32>, vector<8x32xf32>, vector<8x8xf32> -> vector<8x72xf32>
    %cst_24 = arith.constant dense<0.000000e+00> : vector<8x32xf32>
    %68 = tpu.matmul %67, %1, %cst_24 {dimension_numbers = #tpu.dot_dimension_numbers<[1], [0], [0], [1], [0, 0, 1, 1], [], []>} : vector<8x72xf32>, vector<72x32xf32>, vector<8x32xf32> -> vector<8x32xf32>
    %69 = math.tanh %68 : vector<8x32xf32>
    %cst_25 = arith.constant dense<0.000000e+00> : vector<8x16xf32>
    %70 = tpu.matmul %66, %2, %cst_25 {dimension_numbers = #tpu.dot_dimension_numbers<[1], [0], [0], [1], [0, 0, 1, 1], [], []>} : vector<8x32xf32>, vector<32x16xf32>, vector<8x16xf32> -> vector<8x16xf32>
    %71 = arith.addf %70, %3 : vector<8x16xf32>
    %c0_26 = arith.constant 0 : index
    %c0_27 = arith.constant 0 : index
    %72 = vector.load %arg3[%c0_26, %c0_27] : memref<8x16xf32, #tpu.memory_space<vmem>>, vector<8x16xf32>
    tpu.vector_store %arg3[%c0_26, %c0_27], %71 {strides = array<i32>} : memref<8x16xf32, #tpu.memory_space<vmem>>, vector<8x16xf32>,
    %73 = tpu.concatenate %20, %27, %34, %41, %48, %55, %62, %69 in 1 : vector<8x32xf32>, vector<8x32xf32>, vector<8x32xf32>, vector<8x32xf32>, vector<8x32xf32>, vector<8x32xf32>, vector<8x32xf32>, vector<8x32xf32> -> vector<8x256xf32>
    %cst_28 = arith.constant dense<0.000000e+00> : vector<8x64xf32>
    %74 = tpu.matmul %73, %4, %cst_28 {dimension_numbers = #tpu.dot_dimension_numbers<[1], [0], [0], [1], [0, 0, 1, 1], [], []>} : vector<8x256xf32>, vector<256x64xf32>, vector<8x64xf32> -> vector<8x64xf32>
    %75 = arith.addf %74, %5 : vector<8x64xf32>
    %c0_29 = arith.constant 0 : index
    %c0_30 = arith.constant 0 : index
    %76 = vector.load %arg2[%c0_29, %c0_30] : memref<8x64xf32, #tpu.memory_space<vmem>>, vector<8x64xf32>
    tpu.vector_store %arg2[%c0_29, %c0_30], %75 {strides = array<i32>} : memref<8x64xf32, #tpu.memory_space<vmem>>, vector<8x64xf32>,
    return
  }
}

</mosaic_0001>

<llo_original>
// kernel: acled_forward.1
$region0: #{acled_forward.1}
  #allocation0 [shape = 'u32[]', space=smem, size = 0x4, offset = 0x4, fixed_abs, tag = 'smem constant byte address 0x4 - core index']
  #allocation1 [shape = 'u32[144,128]{1,0:T(1,128)}', space=vmem, size = 0x12000, scoped, tag = 'internal scratch']
  %s0 = inlined_call_operand.vmem [shape: f32[8,64], index: 0, kind: input, shape index: {}]
  %s1 = inlined_call_operand.vmem [shape: f32[424,64], index: 1, kind: input, shape index: {}]
  %s2 = inlined_call_operand.vmem [shape: f32[8,64], index: 2, kind: output, shape index: {0}]
  %s3 = inlined_call_operand.hbm [shape: f32[8,16], index: 3, kind: output, shape index: {1}]
  %4 = xla_tuple %s2, %s3
  %s5 = sld [smem:[#allocation0]]
  $region26: #{acled_forward.1} parent=0
    _
  %s7 = ssub.s32 1, %s5
  %s8 = scalar_select 0, %s7, %s5
  $region1: #{acled_forward.1} parent=0
    #allocation2 [shape = 'u8[4096]{0}', space=vmem, size = 0x1000, scoped, tag = 'output window, operand 1, single buffered']
    #allocation3 [shape = 's32[1]{0}', space=sflag, size = 0x4, scoped, tag = 'scoped memory for acled_forward.1']
    %9 = vsyncpa [#allocation3], 0
    // Predicated region
    $region2: #{acled_forward.1} parent=1 // pred_check
      _
    $region3: #{acled_forward.1} parent=1 // pred_check_branch
      %11 = sbr.rel (0) target = $region5
    $region4: #{acled_forward.1} parent=1 // pred_region
      _
    $region5: #{acled_forward.1} parent=1 // pred_fallthru
      _
    // Predicated region
    $region6: #{acled_forward.1} parent=1 // pred_check
      _
    $region7: #{acled_forward.1} parent=1 // pred_check_branch
      %13 = sbr.rel (0) target = $region9
    $region8: #{acled_forward.1} parent=1 // pred_region
      _
    $region9: #{acled_forward.1} parent=1 // pred_fallthru
      _
    %v14 = vld [vmem:[%s1] sm:$0xff]
    %v15 = vld [vmem:[%s1 + $0x8] sm:$0xff]
    %v16 = vld [vmem:[%s1 + $0x10] sm:$0xff]
    %v17 = vld [vmem:[%s1 + $0x18] sm:$0xff]
    %v18 = vld [vmem:[%s1 + $0x20] sm:$0xff]
    %v19 = vld [vmem:[%s1 + $0x28] sm:$0xff]
    %v20 = vld [vmem:[%s1 + $0x30] sm:$0xff]
    %v21 = vld [vmem:[%s1 + $0x38] sm:$0xff]
    %v22 = vld [vmem:[%s1 + $0x40] sm:$0xff]
    %v23 = vld [vmem:[%s1 + $0x48] sm:$0xff]
    %v24 = vld [vmem:[%s1 + $0x50] sm:$0xff]
    %v25 = vld [vmem:[%s1 + $0x58] sm:$0xff]
    %v26 = vld [vmem:[%s1 + $0x60] sm:$0xff]
    %v27 = vld [vmem:[%s1 + $0x68] sm:$0xff]
    %v28 = vld [vmem:[%s1 + $0x70] sm:$0xff]
    %v29 = vld [vmem:[%s1 + $0x78] sm:$0xff]
    %v30 = vld [vmem:[%s1 + $0x80] sm:$0xff]
    %v31 = vld [vmem:[%s1 + $0x88] sm:$0xff]
    %v32 = vld [vmem:[%s1 + $0x90] sm:$0xff]
    %v33 = vld [vmem:[%s1 + $0x98] sm:$0xff]
    %v34 = vld [vmem:[%s1 + $0xa0] sm:$0xff]
    %v35 = vld [vmem:[%s1 + $0xa8] sm:$0xff]
    %v36 = vld [vmem:[%s1 + $0xb0] sm:$0xff]
    %v37 = vld [vmem:[%s1 + $0xb8] sm:$0xff]
    %v38 = vld [vmem:[%s1 + $0xc0] sm:$0xff]
    %v39 = vld [vmem:[%s1 + $0xc8] sm:$0xff]
    %v40 = vld [vmem:[%s1 + $0xd0] sm:$0xff]
    %v41 = vld [vmem:[%s1 + $0xd8] sm:$0xff]
    %v42 = vld [vmem:[%s1 + $0xe0] sm:$0xff]
    %v43 = vld [vmem:[%s1 + $0xe8] sm:$0xff]
    %v44 = vld [vmem:[%s1 + $0xf0] sm:$0xff]
    %v45 = vld [vmem:[%s1 + $0xf8] sm:$0xff]
    %v46 = vld [vmem:[%s1 + $0x100] sm:$0xff]
    %v47 = vld [vmem:[%s1 + $0x108] sm:$0xff]
    %v48 = vld [vmem:[%s1 + $0x110] sm:$0xff]
    %v49 = vld [vmem:[%s1 + $0x118] sm:$0xff]
    %v50 = vld [vmem:[%s1 + $0x120] sm:$0xff]
    %v51 = vld [vmem:[%s1 + $0x128] sm:$0xff]
    %v52 = vld [vmem:[%s1 + $0x130] sm:$0xff]
    %v53 = vld [vmem:[%s1 + $0x138] sm:$0xff]
    %v54 = vld [vmem:[%s1 + $0x140] sm:$0xff]
    %v55 = vld [vmem:[%s1 + $0x148] sm:$0xff]
    %v56 = vld [vmem:[%s1 + $0x150] sm:$0xff]
    %v57 = vld [vmem:[%s1 + $0x158] sm:$0xff]
    %v58 = vld [vmem:[%s1 + $0x160] sm:$0xff]
    %v59 = vld [vmem:[%s1 + $0x168] sm:$0xff]
    %v60 = vld [vmem:[%s1 + $0x170] sm:$0xff]
    %v61 = vld [vmem:[%s1 + $0x178] sm:$0xff]
    %v62 = vld [vmem:[%s1 + $0x180] sm:$0xff]
    %v63 = vld [vmem:[%s1 + $0x188] sm:$0xff]
    %v64 = vld [vmem:[%s1 + $0x190] sm:$0xff]
    %v65 = vld [vmem:[%s1 + $0x198] sm:$0xff]
    %v66 = vld [vmem:[%s1 + $0x1a0] sm:$0xff]
    %v67 = vld [vmem:[%s0] sm:$0xff]
    %v68 = vlaneseq
    %v69 = vand.u32 %v68, 127
    %vm70 = vcmp.eq.s32.totalorder %v69, 0
    %v71 = vsel %vm70, 1, 0
    %v72 = vcvt.s32.f32 %v71
    %74 = vrot.lane.b32.xlu0 %v72, 40
    %v75 = vpop.permute.xlu0 %74
    %vm77 = vcmask 64512
    %v78 = vsel %vm77, %v67, 0.0
    %vm79 = vcmask 326656
    %v80 = vsel %vm79, %v78, %v75
    %vm81 = vcmask 392192
    %v83 = vsel %vm81, %v80, 0
    %85 = vmatprep.subr.mxu0 0.0
    %86 = vmatpush1.msra.mxu0 %v14
    %87 = vmatprep.subr.mxu0 0.0
    %88 = vmatpush1.msra.mxu0 %v15
    %89 = vmatprep.subr.mxu0 0.0
    %90 = vmatpush1.msra.mxu0 %v16
    %91 = vmatprep.subr.mxu0 0.0
    %92 = vmatpush1.msra.mxu0 %v17
    %93 = vmatprep.subr.mxu0 0.0
    %94 = vmatpush1.msra.mxu0 %v18
    %95 = vmatprep.subr.mxu0 0.0
    %96 = vmatpush1.msra.mxu0 %v19
    %97 = vmatprep.subr.mxu0 0.0
    %98 = vmatpush1.msra.mxu0 0.0
    %99 = vmatprep.subr.mxu0 0.0
    %100 = vmatpush1.msra.mxu0 0.0
    %101 = vmatprep.subr.mxu0 0.0
    %102 = vmatpush1.msra.mxu0 0.0
    %103 = vmatprep.subr.mxu0 0.0
    %104 = vmatpush1.msra.mxu0 0.0
    %105 = vmatprep.subr.mxu0 0.0
    %106 = vmatpush1.msra.mxu0 0.0
    %107 = vmatprep.subr.mxu0 0.0
    %108 = vmatpush1.msra.mxu0 0.0
    %109 = vmatprep.subr.mxu0 0.0
    %110 = vmatpush1.msra.mxu0 0.0
    %111 = vmatprep.subr.mxu0 0.0
    %112 = vmatpush1.msra.mxu0 0.0
    %113 = vmatprep.subr.mxu0 0.0
    %114 = vmatpush1.msra.mxu0 0.0
    %115 = vmatprep.subr.mxu0 0.0
    %116 = vmatpush1.msra.mxu0 0.0
    %117 = vmatprep.subr.mxu0 0.0
    %118 = vmatpush1.msra.mxu0 0.0
    %119 = vmatprep.subr.mxu0 0.0
    %120 = vmatpush1.msra.mxu0 0.0
    %121 = vmatprep.subr.mxu0 0.0
    %122 = vmatpush1.msra.mxu0 0.0
    %123 = vmatprep.subr.mxu0 0.0
    %124 = vmatpush1.msra.mxu0 0.0
    %125 = vmatprep.subr.mxu0 0.0
    %126 = vmatpush1.msra.mxu0 0.0
    %127 = vmatprep.subr.mxu0 0.0
    %128 = vmatpush1.msra.mxu0 0.0
    %129 = vmatprep.subr.mxu0 0.0
    %130 = vmatpush1.msra.mxu0 0.0
    %131 = vmatprep.subr.mxu0 0.0
    %132 = vmatpush1.msra.mxu0 0.0
    %133 = vmatprep.subr.mxu0 0.0
    %134 = vmatpush1.msra.mxu0 0.0
    %135 = vmatprep.subr.mxu0 0.0
    %136 = vmatpush1.msra.mxu0 0.0
    %137 = vmatprep.subr.mxu0 0.0
    %138 = vmatpush1.msra.mxu0 0.0
    %139 = vmatprep.subr.mxu0 0.0
    %140 = vmatpush1.msra.mxu0 0.0
    %141 = vmatprep.subr.mxu0 0.0
    %142 = vmatpush1.msra.mxu0 0.0
    %143 = vmatprep.subr.mxu0 0.0
    %144 = vmatpush1.msra.mxu0 0.0
    %145 = vmatprep.subr.mxu0 0.0
    %146 = vmatpush1.msra.mxu0 0.0
    %147 = vmatprep.subr.mxu0 0.0
    %148 = vmatpush1.msra.mxu0 0.0
    %149 = vmatprep.mubr.f32.mxu0 0.0
    %150 = vmatmul.mubr.f32.gmra.mrb[0].mxu0 %v83
    %v151 = vpop.f32.mrb[0].mxu0
    %v152 = vadd.f32 0.0, %v151
    %v153 = vpop.f32.mrb[0].mxu0
    %154 = vdwg.mxu0
    %v155 = vtanh.pop %v152
    %156 = vrot.lane.b32.xlu0 %v72, 64
    %v157 = vpop.permute.xlu0 %156
    %vm159 = vcmask 261120
    %v160 = vsel %vm159, %v155, 0.0
    %vm161 = vcmask 523264
    %v162 = vsel %vm161, %v160, %v157
    %vm163 = vcmask 588800
    %v165 = vsel %vm163, %v162, 0
    %167 = vmatprep.subr.mxu0 0.0
    %168 = vmatpush1.msra.mxu0 %v20
    %169 = vmatprep.subr.mxu0 0.0
    %170 = vmatpush1.msra.mxu0 %v21
    %171 = vmatprep.subr.mxu0 0.0
    %172 = vmatpush1.msra.mxu0 %v22
    %173 = vmatprep.subr.mxu0 0.0
    %174 = vmatpush1.msra.mxu0 %v23
    %175 = vmatprep.subr.mxu0 0.0
    %176 = vmatpush1.msra.mxu0 %v24
    %177 = vmatprep.subr.mxu0 0.0
    %178 = vmatpush1.msra.mxu0 %v25
    %179 = vmatprep.subr.mxu0 0.0
    %180 = vmatpush1.msra.mxu0 %v26
    %181 = vmatprep.subr.mxu0 0.0
    %182 = vmatpush1.msra.mxu0 %v27
    %183 = vmatprep.subr.mxu0 0.0
    %184 = vmatpush1.msra.mxu0 %v28
    %185 = vmatprep.subr.mxu0 0.0
    %186 = vmatpush1.msra.mxu0 0.0
    %187 = vmatprep.subr.mxu0 0.0
    %188 = vmatpush1.msra.mxu0 0.0
    %189 = vmatprep.subr.mxu0 0.0
    %190 = vmatpush1.msra.mxu0 0.0
    %191 = vmatprep.subr.mxu0 0.0
    %192 = vmatpush1.msra.mxu0 0.0
    %193 = vmatprep.subr.mxu0 0.0
    %194 = vmatpush1.msra.mxu0 0.0
    %195 = vmatprep.subr.mxu0 0.0
    %196 = vmatpush1.msra.mxu0 0.0
    %197 = vmatprep.subr.mxu0 0.0
    %198 = vmatpush1.msra.mxu0 0.0
    %199 = vmatprep.subr.mxu0 0.0
    %200 = vmatpush1.msra.mxu0 0.0
    %201 = vmatprep.subr.mxu0 0.0
    %202 = vmatpush1.msra.mxu0 0.0
    %203 = vmatprep.subr.mxu0 0.0
    %204 = vmatpush1.msra.mxu0 0.0
    %205 = vmatprep.subr.mxu0 0.0
    %206 = vmatpush1.msra.mxu0 0.0
    %207 = vmatprep.subr.mxu0 0.0
    %208 = vmatpush1.msra.mxu0 0.0
    %209 = vmatprep.subr.mxu0 0.0
    %210 = vmatpush1.msra.mxu0 0.0
    %211 = vmatprep.subr.mxu0 0.0
    %212 = vmatpush1.msra.mxu0 0.0
    %213 = vmatprep.subr.mxu0 0.0
    %214 = vmatpush1.msra.mxu0 0.0
    %215 = vmatprep.subr.mxu0 0.0
    %216 = vmatpush1.msra.mxu0 0.0
    %217 = vmatprep.subr.mxu0 0.0
    %218 = vmatpush1.msra.mxu0 0.0
    %219 = vmatprep.subr.mxu0 0.0
    %220 = vmatpush1.msra.mxu0 0.0
    %221 = vmatprep.subr.mxu0 0.0
    %222 = vmatpush1.msra.mxu0 0.0
    %223 = vmatprep.subr.mxu0 0.0
    %224 = vmatpush1.msra.mxu0 0.0
    %225 = vmatprep.subr.mxu0 0.0
    %226 = vmatpush1.msra.mxu0 0.0
    %227 = vmatprep.subr.mxu0 0.0
    %228 = vmatpush1.msra.mxu0 0.0
    %229 = vmatprep.subr.mxu0 0.0
    %230 = vmatpush1.msra.mxu0 0.0
    %231 = vmatprep.mubr.f32.mxu0 0.0
    %232 = vmatmul.mubr.f32.gmra.mrb[0].mxu0 %v165
    %v233 = vpop.f32.mrb[0].mxu0
    %v234 = vadd.f32 0.0, %v233
    %v235 = vpop.f32.mrb[0].mxu0
    %236 = vdwg.mxu0
    %v237 = vtanh.pop %v234
    %239 = vrot.lane.b32.xlu0 %v67, 120
    %v240 = vpop.permute.xlu0 %239
    %243 = vrot.lane.b32.xlu0 %v155, 8
    %v244 = vpop.permute.xlu0 %243
    %v246 = vsel %vm77, %v240, %v244
    %v247 = vsel %vm79, %v246, %v75
    %v249 = vsel %vm81, %v247, 0
    %251 = vmatprep.subr.mxu0 0.0
    %252 = vmatpush1.msra.mxu0 %v14
    %253 = vmatprep.subr.mxu0 0.0
    %254 = vmatpush1.msra.mxu0 %v15
    %255 = vmatprep.subr.mxu0 0.0
    %256 = vmatpush1.msra.mxu0 %v16
    %257 = vmatprep.subr.mxu0 0.0
    %258 = vmatpush1.msra.mxu0 %v17
    %259 = vmatprep.subr.mxu0 0.0
    %260 = vmatpush1.msra.mxu0 %v18
    %261 = vmatprep.subr.mxu0 0.0
    %262 = vmatpush1.msra.mxu0 %v19
    %263 = vmatprep.subr.mxu0 0.0
    %264 = vmatpush1.msra.mxu0 0.0
    %265 = vmatprep.subr.mxu0 0.0
    %266 = vmatpush1.msra.mxu0 0.0
    %267 = vmatprep.subr.mxu0 0.0
    %268 = vmatpush1.msra.mxu0 0.0
    %269 = vmatprep.subr.mxu0 0.0
    %270 = vmatpush1.msra.mxu0 0.0
    %271 = vmatprep.subr.mxu0 0.0
    %272 = vmatpush1.msra.mxu0 0.0
    %273 = vmatprep.subr.mxu0 0.0
    %274 = vmatpush1.msra.mxu0 0.0
    %275 = vmatprep.subr.mxu0 0.0
    %276 = vmatpush1.msra.mxu0 0.0
    %277 = vmatprep.subr.mxu0 0.0
    %278 = vmatpush1.msra.mxu0 0.0
    %279 = vmatprep.subr.mxu0 0.0
    %280 = vmatpush1.msra.mxu0 0.0
    %281 = vmatprep.subr.mxu0 0.0
    %282 = vmatpush1.msra.mxu0 0.0
    %283 = vmatprep.subr.mxu0 0.0
    %284 = vmatpush1.msra.mxu0 0.0
    %285 = vmatprep.subr.mxu0 0.0
    %286 = vmatpush1.msra.mxu0 0.0
    %287 = vmatprep.subr.mxu0 0.0
    %288 = vmatpush1.msra.mxu0 0.0
    %289 = vmatprep.subr.mxu0 0.0
    %290 = vmatpush1.msra.mxu0 0.0
    %291 = vmatprep.subr.mxu0 0.0
    %292 = vmatpush1.msra.mxu0 0.0
    %293 = vmatprep.subr.mxu0 0.0
    %294 = vmatpush1.msra.mxu0 0.0
    %295 = vmatprep.subr.mxu0 0.0
    %296 = vmatpush1.msra.mxu0 0.0
    %297 = vmatprep.subr.mxu0 0.0
    %298 = vmatpush1.msra.mxu0 0.0
    %299 = vmatprep.subr.mxu0 0.0
    %300 = vmatpush1.msra.mxu0 0.0
    %301 = vmatprep.subr.mxu0 0.0
    %302 = vmatpush1.msra.mxu0 0.0
    %303 = vmatprep.subr.mxu0 0.0
    %304 = vmatpush1.msra.mxu0 0.0
    %305 = vmatprep.subr.mxu0 0.0
    %306 = vmatpush1.msra.mxu0 0.0
    %307 = vmatprep.subr.mxu0 0.0
    %308 = vmatpush1.msra.mxu0 0.0
    %309 = vmatprep.subr.mxu0 0.0
    %310 = vmatpush1.msra.mxu0 0.0
    %311 = vmatprep.subr.mxu0 0.0
    %312 = vmatpush1.msra.mxu0 0.0
    %313 = vmatprep.subr.mxu0 0.0
    %314 = vmatpush1.msra.mxu0 0.0
    %315 = vmatprep.mubr.f32.mxu0 0.0
    %316 = vmatmul.mubr.f32.gmra.mrb[0].mxu0 %v249
    %v317 = vpop.f32.mrb[0].mxu0
    %v318 = vadd.f32 0.0, %v317
    %v319 = vpop.f32.mrb[0].mxu0
    %320 = vdwg.mxu0
    %v321 = vtanh.pop %v318
    %323 = vrot.lane.b32.xlu0 %v237, 32
    %v324 = vpop.permute.xlu0 %323
    %v326 = vsel %vm159, %v321, %v324
    %v327 = vsel %vm161, %v326, %v157
    %v329 = vsel %vm163, %v327, 0
    %331 = vmatprep.subr.mxu0 0.0
    %332 = vmatpush1.msra.mxu0 %v20
    %333 = vmatprep.subr.mxu0 0.0
    %334 = vmatpush1.msra.mxu0 %v21
    %335 = vmatprep.subr.mxu0 0.0
    %336 = vmatpush1.msra.mxu0 %v22
    %337 = vmatprep.subr.mxu0 0.0
    %338 = vmatpush1.msra.mxu0 %v23
    %339 = vmatprep.subr.mxu0 0.0
    %340 = vmatpush1.msra.mxu0 %v24
    %341 = vmatprep.subr.mxu0 0.0
    %342 = vmatpush1.msra.mxu0 %v25
    %343 = vmatprep.subr.mxu0 0.0
    %344 = vmatpush1.msra.mxu0 %v26
    %345 = vmatprep.subr.mxu0 0.0
    %346 = vmatpush1.msra.mxu0 %v27
    %347 = vmatprep.subr.mxu0 0.0
    %348 = vmatpush1.msra.mxu0 %v28
    %349 = vmatprep.subr.mxu0 0.0
    %350 = vmatpush1.msra.mxu0 0.0
    %351 = vmatprep.subr.mxu0 0.0
    %352 = vmatpush1.msra.mxu0 0.0
    %353 = vmatprep.subr.mxu0 0.0
    %354 = vmatpush1.msra.mxu0 0.0
    %355 = vmatprep.subr.mxu0 0.0
    %356 = vmatpush1.msra.mxu0 0.0
    %357 = vmatprep.subr.mxu0 0.0
    %358 = vmatpush1.msra.mxu0 0.0
    %359 = vmatprep.subr.mxu0 0.0
    %360 = vmatpush1.msra.mxu0 0.0
    %361 = vmatprep.subr.mxu0 0.0
    %362 = vmatpush1.msra.mxu0 0.0
    %363 = vmatprep.subr.mxu0 0.0
    %364 = vmatpush1.msra.mxu0 0.0
    %365 = vmatprep.subr.mxu0 0.0
    %366 = vmatpush1.msra.mxu0 0.0
    %367 = vmatprep.subr.mxu0 0.0
    %368 = vmatpush1.msra.mxu0 0.0
    %369 = vmatprep.subr.mxu0 0.0
    %370 = vmatpush1.msra.mxu0 0.0
    %371 = vmatprep.subr.mxu0 0.0
    %372 = vmatpush1.msra.mxu0 0.0
    %373 = vmatprep.subr.mxu0 0.0
    %374 = vmatpush1.msra.mxu0 0.0
    %375 = vmatprep.subr.mxu0 0.0
    %376 = vmatpush1.msra.mxu0 0.0
    %377 = vmatprep.subr.mxu0 0.0
    %378 = vmatpush1.msra.mxu0 0.0
    %379 = vmatprep.subr.mxu0 0.0
    %380 = vmatpush1.msra.mxu0 0.0
    %381 = vmatprep.subr.mxu0 0.0
    %382 = vmatpush1.msra.mxu0 0.0
    %383 = vmatprep.subr.mxu0 0.0
    %384 = vmatpush1.msra.mxu0 0.0
    %385 = vmatprep.subr.mxu0 0.0
    %386 = vmatpush1.msra.mxu0 0.0
    %387 = vmatprep.subr.mxu0 0.0
    %388 = vmatpush1.msra.mxu0 0.0
    %389 = vmatprep.subr.mxu0 0.0
    %390 = vmatpush1.msra.mxu0 0.0
    %391 = vmatprep.subr.mxu0 0.0
    %392 = vmatpush1.msra.mxu0 0.0
    %393 = vmatprep.subr.mxu0 0.0
    %394 = vmatpush1.msra.mxu0 0.0
    %395 = vmatprep.mubr.f32.mxu0 0.0
    %396 = vmatmul.mubr.f32.gmra.mrb[0].mxu0 %v329
    %v397 = vpop.f32.mrb[0].mxu0
    %v398 = vadd.f32 0.0, %v397
    %v399 = vpop.f32.mrb[0].mxu0
    %400 = vdwg.mxu0
    %v401 = vtanh.pop %v398
    %402 = vrot.lane.b32.xlu0 %v67, 112
    %v403 = vpop.permute.xlu0 %402
    %406 = vrot.lane.b32.xlu0 %v321, 8
    %v407 = vpop.permute.xlu0 %406
    %v409 = vsel %vm77, %v403, %v407
    %v410 = vsel %vm79, %v409, %v75
    %v412 = vsel %vm81, %v410, 0
    %414 = vmatprep.subr.mxu0 0.0
    %415 = vmatpush1.msra.mxu0 %v14
    %416 = vmatprep.subr.mxu0 0.0
    %417 = vmatpush1.msra.mxu0 %v15
    %418 = vmatprep.subr.mxu0 0.0
    %419 = vmatpush1.msra.mxu0 %v16
    %420 = vmatprep.subr.mxu0 0.0
    %421 = vmatpush1.msra.mxu0 %v17
    %422 = vmatprep.subr.mxu0 0.0
    %423 = vmatpush1.msra.mxu0 %v18
    %424 = vmatprep.subr.mxu0 0.0
    %425 = vmatpush1.msra.mxu0 %v19
    %426 = vmatprep.subr.mxu0 0.0
    %427 = vmatpush1.msra.mxu0 0.0
    %428 = vmatprep.subr.mxu0 0.0
    %429 = vmatpush1.msra.mxu0 0.0
    %430 = vmatprep.subr.mxu0 0.0
    %431 = vmatpush1.msra.mxu0 0.0
    %432 = vmatprep.subr.mxu0 0.0
    %433 = vmatpush1.msra.mxu0 0.0
    %434 = vmatprep.subr.mxu0 0.0
    %435 = vmatpush1.msra.mxu0 0.0
    %436 = vmatprep.subr.mxu0 0.0
    %437 = vmatpush1.msra.mxu0 0.0
    %438 = vmatprep.subr.mxu0 0.0
    %439 = vmatpush1.msra.mxu0 0.0
    %440 = vmatprep.subr.mxu0 0.0
    %441 = vmatpush1.msra.mxu0 0.0
    %442 = vmatprep.subr.mxu0 0.0
    %443 = vmatpush1.msra.mxu0 0.0
    %444 = vmatprep.subr.mxu0 0.0
    %445 = vmatpush1.msra.mxu0 0.0
    %446 = vmatprep.subr.mxu0 0.0
    %447 = vmatpush1.msra.mxu0 0.0
    %448 = vmatprep.subr.mxu0 0.0
    %449 = vmatpush1.msra.mxu0 0.0
    %450 = vmatprep.subr.mxu0 0.0
    %451 = vmatpush1.msra.mxu0 0.0
    %452 = vmatprep.subr.mxu0 0.0
    %453 = vmatpush1.msra.mxu0 0.0
    %454 = vmatprep.subr.mxu0 0.0
    %455 = vmatpush1.msra.mxu0 0.0
    %456 = vmatprep.subr.mxu0 0.0
    %457 = vmatpush1.msra.mxu0 0.0
    %458 = vmatprep.subr.mxu0 0.0
    %459 = vmatpush1.msra.mxu0 0.0
    %460 = vmatprep.subr.mxu0 0.0
    %461 = vmatpush1.msra.mxu0 0.0
    %462 = vmatprep.subr.mxu0 0.0
    %463 = vmatpush1.msra.mxu0 0.0
    %464 = vmatprep.subr.mxu0 0.0
    %465 = vmatpush1.msra.mxu0 0.0
    %466 = vmatprep.subr.mxu0 0.0
    %467 = vmatpush1.msra.mxu0 0.0
    %468 = vmatprep.subr.mxu0 0.0
    %469 = vmatpush1.msra.mxu0 0.0
    %470 = vmatprep.subr.mxu0 0.0
    %471 = vmatpush1.msra.mxu0 0.0
    %472 = vmatprep.subr.mxu0 0.0
    %473 = vmatpush1.msra.mxu0 0.0
    %474 = vmatprep.subr.mxu0 0.0
    %475 = vmatpush1.msra.mxu0 0.0
    %476 = vmatprep.subr.mxu0 0.0
    %477 = vmatpush1.msra.mxu0 0.0
    %478 = vmatprep.mubr.f32.mxu0 0.0
    %479 = vmatmul.mubr.f32.gmra.mrb[0].mxu0 %v412
    %v480 = vpop.f32.mrb[0].mxu0
    %v481 = vadd.f32 0.0, %v480
    %v482 = vpop.f32.mrb[0].mxu0
    %483 = vdwg.mxu0
    %v484 = vtanh.pop %v481
    %486 = vrot.lane.b32.xlu0 %v401, 32
    %v487 = vpop.permute.xlu0 %486
    %v489 = vsel %vm159, %v484, %v487
    %v490 = vsel %vm161, %v489, %v157
    %v492 = vsel %vm163, %v490, 0
    %494 = vmatprep.subr.mxu0 0.0
    %495 = vmatpush1.msra.mxu0 %v20
    %496 = vmatprep.subr.mxu0 0.0
    %497 = vmatpush1.msra.mxu0 %v21
    %498 = vmatprep.subr.mxu0 0.0
    %499 = vmatpush1.msra.mxu0 %v22
    %500 = vmatprep.subr.mxu0 0.0
    %501 = vmatpush1.msra.mxu0 %v23
    %502 = vmatprep.subr.mxu0 0.0
    %503 = vmatpush1.msra.mxu0 %v24
    %504 = vmatprep.subr.mxu0 0.0
    %505 = vmatpush1.msra.mxu0 %v25
    %506 = vmatprep.subr.mxu0 0.0
    %507 = vmatpush1.msra.mxu0 %v26
    %508 = vmatprep.subr.mxu0 0.0
    %509 = vmatpush1.msra.mxu0 %v27
    %510 = vmatprep.subr.mxu0 0.0
    %511 = vmatpush1.msra.mxu0 %v28
    %512 = vmatprep.subr.mxu0 0.0
    %513 = vmatpush1.msra.mxu0 0.0
    %514 = vmatprep.subr.mxu0 0.0
    %515 = vmatpush1.msra.mxu0 0.0
    %516 = vmatprep.subr.mxu0 0.0
    %517 = vmatpush1.msra.mxu0 0.0
    %518 = vmatprep.subr.mxu0 0.0
    %519 = vmatpush1.msra.mxu0 0.0
    %520 = vmatprep.subr.mxu0 0.0
    %521 = vmatpush1.msra.mxu0 0.0
    %522 = vmatprep.subr.mxu0 0.0
    %523 = vmatpush1.msra.mxu0 0.0
    %524 = vmatprep.subr.mxu0 0.0
    %525 = vmatpush1.msra.mxu0 0.0
    %526 = vmatprep.subr.mxu0 0.0
    %527 = vmatpush1.msra.mxu0 0.0
    %528 = vmatprep.subr.mxu0 0.0
    %529 = vmatpush1.msra.mxu0 0.0
    %530 = vmatprep.subr.mxu0 0.0
    %531 = vmatpush1.msra.mxu0 0.0
    %532 = vmatprep.subr.mxu0 0.0
    %533 = vmatpush1.msra.mxu0 0.0
    %534 = vmatprep.subr.mxu0 0.0
    %535 = vmatpush1.msra.mxu0 0.0
    %536 = vmatprep.subr.mxu0 0.0
    %537 = vmatpush1.msra.mxu0 0.0
    %538 = vmatprep.subr.mxu0 0.0
    %539 = vmatpush1.msra.mxu0 0.0
    %540 = vmatprep.subr.mxu0 0.0
    %541 = vmatpush1.msra.mxu0 0.0
    %542 = vmatprep.subr.mxu0 0.0
    %543 = vmatpush1.msra.mxu0 0.0
    %544 = vmatprep.subr.mxu0 0.0
    %545 = vmatpush1.msra.mxu0 0.0
    %546 = vmatprep.subr.mxu0 0.0
    %547 = vmatpush1.msra.mxu0 0.0
    %548 = vmatprep.subr.mxu0 0.0
    %549 = vmatpush1.msra.mxu0 0.0
    %550 = vmatprep.subr.mxu0 0.0
    %551 = vmatpush1.msra.mxu0 0.0
    %552 = vmatprep.subr.mxu0 0.0
    %553 = vmatpush1.msra.mxu0 0.0
    %554 = vmatprep.subr.mxu0 0.0
    %555 = vmatpush1.msra.mxu0 0.0
    %556 = vmatprep.subr.mxu0 0.0
    %557 = vmatpush1.msra.mxu0 0.0
    %558 = vmatprep.mubr.f32.mxu0 0.0
    %559 = vmatmul.mubr.f32.gmra.mrb[0].mxu0 %v492
    %v560 = vpop.f32.mrb[0].mxu0
    %v561 = vadd.f32 0.0, %v560
    %v562 = vpop.f32.mrb[0].mxu0
    %563 = vdwg.mxu0
    %v564 = vtanh.pop %v561
    %565 = vrot.lane.b32.xlu0 %v67, 104
    %v566 = vpop.permute.xlu0 %565
    %569 = vrot.lane.b32.xlu0 %v484, 8
    %v570 = vpop.permute.xlu0 %569
    %v572 = vsel %vm77, %v566, %v570
    %v573 = vsel %vm79, %v572, %v75
    %v575 = vsel %vm81, %v573, 0
    %577 = vmatprep.subr.mxu0 0.0
    %578 = vmatpush1.msra.mxu0 %v14
    %579 = vmatprep.subr.mxu0 0.0
    %580 = vmatpush1.msra.mxu0 %v15
    %581 = vmatprep.subr.mxu0 0.0
    %582 = vmatpush1.msra.mxu0 %v16
    %583 = vmatprep.subr.mxu0 0.0
    %584 = vmatpush1.msra.mxu0 %v17
    %585 = vmatprep.subr.mxu0 0.0
    %586 = vmatpush1.msra.mxu0 %v18
    %587 = vmatprep.subr.mxu0 0.0
    %588 = vmatpush1.msra.mxu0 %v19
    %589 = vmatprep.subr.mxu0 0.0
    %590 = vmatpush1.msra.mxu0 0.0
    %591 = vmatprep.subr.mxu0 0.0
    %592 = vmatpush1.msra.mxu0 0.0
    %593 = vmatprep.subr.mxu0 0.0
    %594 = vmatpush1.msra.mxu0 0.0
    %595 = vmatprep.subr.mxu0 0.0
    %596 = vmatpush1.msra.mxu0 0.0
    %597 = vmatprep.subr.mxu0 0.0
    %598 = vmatpush1.msra.mxu0 0.0
    %599 = vmatprep.subr.mxu0 0.0
    %600 = vmatpush1.msra.mxu0 0.0
    %601 = vmatprep.subr.mxu0 0.0
    %602 = vmatpush1.msra.mxu0 0.0
    %603 = vmatprep.subr.mxu0 0.0
    %604 = vmatpush1.msra.mxu0 0.0
    %605 = vmatprep.subr.mxu0 0.0
    %606 = vmatpush1.msra.mxu0 0.0
    %607 = vmatprep.subr.mxu0 0.0
    %608 = vmatpush1.msra.mxu0 0.0
    %609 = vmatprep.subr.mxu0 0.0
    %610 = vmatpush1.msra.mxu0 0.0
    %611 = vmatprep.subr.mxu0 0.0
    %612 = vmatpush1.msra.mxu0 0.0
    %613 = vmatprep.subr.mxu0 0.0
    %614 = vmatpush1.msra.mxu0 0.0
    %615 = vmatprep.subr.mxu0 0.0
    %616 = vmatpush1.msra.mxu0 0.0
    %617 = vmatprep.subr.mxu0 0.0
    %618 = vmatpush1.msra.mxu0 0.0
    %619 = vmatprep.subr.mxu0 0.0
    %620 = vmatpush1.msra.mxu0 0.0
    %621 = vmatprep.subr.mxu0 0.0
    %622 = vmatpush1.msra.mxu0 0.0
    %623 = vmatprep.subr.mxu0 0.0
    %624 = vmatpush1.msra.mxu0 0.0
    %625 = vmatprep.subr.mxu0 0.0
    %626 = vmatpush1.msra.mxu0 0.0
    %627 = vmatprep.subr.mxu0 0.0
    %628 = vmatpush1.msra.mxu0 0.0
    %629 = vmatprep.subr.mxu0 0.0
    %630 = vmatpush1.msra.mxu0 0.0
    %631 = vmatprep.subr.mxu0 0.0
    %632 = vmatpush1.msra.mxu0 0.0
    %633 = vmatprep.subr.mxu0 0.0
    %634 = vmatpush1.msra.mxu0 0.0
    %635 = vmatprep.subr.mxu0 0.0
    %636 = vmatpush1.msra.mxu0 0.0
    %637 = vmatprep.subr.mxu0 0.0
    %638 = vmatpush1.msra.mxu0 0.0
    %639 = vmatprep.subr.mxu0 0.0
    %640 = vmatpush1.msra.mxu0 0.0
    %641 = vmatprep.mubr.f32.mxu0 0.0
    %642 = vmatmul.mubr.f32.gmra.mrb[0].mxu0 %v575
    %v643 = vpop.f32.mrb[0].mxu0
    %v644 = vadd.f32 0.0, %v643
    %v645 = vpop.f32.mrb[0].mxu0
    %646 = vdwg.mxu0
    %v647 = vtanh.pop %v644
    %649 = vrot.lane.b32.xlu0 %v564, 32
    %v650 = vpop.permute.xlu0 %649
    %v652 = vsel %vm159, %v647, %v650
    %v653 = vsel %vm161, %v652, %v157
    %v655 = vsel %vm163, %v653, 0
    %657 = vmatprep.subr.mxu0 0.0
    %658 = vmatpush1.msra.mxu0 %v20
    %659 = vmatprep.subr.mxu0 0.0
    %660 = vmatpush1.msra.mxu0 %v21
    %661 = vmatprep.subr.mxu0 0.0
    %662 = vmatpush1.msra.mxu0 %v22
    %663 = vmatprep.subr.mxu0 0.0
    %664 = vmatpush1.msra.mxu0 %v23
    %665 = vmatprep.subr.mxu0 0.0
    %666 = vmatpush1.msra.mxu0 %v24
    %667 = vmatprep.subr.mxu0 0.0
    %668 = vmatpush1.msra.mxu0 %v25
    %669 = vmatprep.subr.mxu0 0.0
    %670 = vmatpush1.msra.mxu0 %v26
    %671 = vmatprep.subr.mxu0 0.0
    %672 = vmatpush1.msra.mxu0 %v27
    %673 = vmatprep.subr.mxu0 0.0
    %674 = vmatpush1.msra.mxu0 %v28
    %675 = vmatprep.subr.mxu0 0.0
    %676 = vmatpush1.msra.mxu0 0.0
    %677 = vmatprep.subr.mxu0 0.0
    %678 = vmatpush1.msra.mxu0 0.0
    %679 = vmatprep.subr.mxu0 0.0
    %680 = vmatpush1.msra.mxu0 0.0
    %681 = vmatprep.subr.mxu0 0.0
    %682 = vmatpush1.msra.mxu0 0.0
    %683 = vmatprep.subr.mxu0 0.0
    %684 = vmatpush1.msra.mxu0 0.0
    %685 = vmatprep.subr.mxu0 0.0
    %686 = vmatpush1.msra.mxu0 0.0
    %687 = vmatprep.subr.mxu0 0.0
    %688 = vmatpush1.msra.mxu0 0.0
    %689 = vmatprep.subr.mxu0 0.0
    %690 = vmatpush1.msra.mxu0 0.0
    %691 = vmatprep.subr.mxu0 0.0
    %692 = vmatpush1.msra.mxu0 0.0
    %693 = vmatprep.subr.mxu0 0.0
    %694 = vmatpush1.msra.mxu0 0.0
    %695 = vmatprep.subr.mxu0 0.0
    %696 = vmatpush1.msra.mxu0 0.0
    %697 = vmatprep.subr.mxu0 0.0
    %698 = vmatpush1.msra.mxu0 0.0
    %699 = vmatprep.subr.mxu0 0.0
    %700 = vmatpush1.msra.mxu0 0.0
    %701 = vmatprep.subr.mxu0 0.0
    %702 = vmatpush1.msra.mxu0 0.0
    %703 = vmatprep.subr.mxu0 0.0
    %704 = vmatpush1.msra.mxu0 0.0
    %705 = vmatprep.subr.mxu0 0.0
    %706 = vmatpush1.msra.mxu0 0.0
    %707 = vmatprep.subr.mxu0 0.0
    %708 = vmatpush1.msra.mxu0 0.0
    %709 = vmatprep.subr.mxu0 0.0
    %710 = vmatpush1.msra.mxu0 0.0
    %711 = vmatprep.subr.mxu0 0.0
    %712 = vmatpush1.msra.mxu0 0.0
    %713 = vmatprep.subr.mxu0 0.0
    %714 = vmatpush1.msra.mxu0 0.0
    %715 = vmatprep.subr.mxu0 0.0
    %716 = vmatpush1.msra.mxu0 0.0
    %717 = vmatprep.subr.mxu0 0.0
    %718 = vmatpush1.msra.mxu0 0.0
    %719 = vmatprep.subr.mxu0 0.0
    %720 = vmatpush1.msra.mxu0 0.0
    %721 = vmatprep.mubr.f32.mxu0 0.0
    %722 = vmatmul.mubr.f32.gmra.mrb[0].mxu0 %v655
    %v723 = vpop.f32.mrb[0].mxu0
    %v724 = vadd.f32 0.0, %v723
    %v725 = vpop.f32.mrb[0].mxu0
    %726 = vdwg.mxu0
    %v727 = vtanh.pop %v724
    %728 = vrot.lane.b32.xlu0 %v67, 96
    %v729 = vpop.permute.xlu0 %728
    %732 = vrot.lane.b32.xlu0 %v647, 8
    %v733 = vpop.permute.xlu0 %732
    %v735 = vsel %vm77, %v729, %v733
    %v736 = vsel %vm79, %v735, %v75
    %v738 = vsel %vm81, %v736, 0
    %740 = vmatprep.subr.mxu0 0.0
    %741 = vmatpush1.msra.mxu0 %v14
    %742 = vmatprep.subr.mxu0 0.0
    %743 = vmatpush1.msra.mxu0 %v15
    %744 = vmatprep.subr.mxu0 0.0
    %745 = vmatpush1.msra.mxu0 %v16
    %746 = vmatprep.subr.mxu0 0.0
    %747 = vmatpush1.msra.mxu0 %v17
    %748 = vmatprep.subr.mxu0 0.0
    %749 = vmatpush1.msra.mxu0 %v18
    %750 = vmatprep.subr.mxu0 0.0
    %751 = vmatpush1.msra.mxu0 %v19
    %752 = vmatprep.subr.mxu0 0.0
    %753 = vmatpush1.msra.mxu0 0.0
    %754 = vmatprep.subr.mxu0 0.0
    %755 = vmatpush1.msra.mxu0 0.0
    %756 = vmatprep.subr.mxu0 0.0
    %757 = vmatpush1.msra.mxu0 0.0
    %758 = vmatprep.subr.mxu0 0.0
    %759 = vmatpush1.msra.mxu0 0.0
    %760 = vmatprep.subr.mxu0 0.0
    %761 = vmatpush1.msra.mxu0 0.0
    %762 = vmatprep.subr.mxu0 0.0
    %763 = vmatpush1.msra.mxu0 0.0
    %764 = vmatprep.subr.mxu0 0.0
    %765 = vmatpush1.msra.mxu0 0.0
    %766 = vmatprep.subr.mxu0 0.0
    %767 = vmatpush1.msra.mxu0 0.0
    %768 = vmatprep.subr.mxu0 0.0
    %769 = vmatpush1.msra.mxu0 0.0
    %770 = vmatprep.subr.mxu0 0.0
    %771 = vmatpush1.msra.mxu0 0.0
    %772 = vmatprep.subr.mxu0 0.0
    %773 = vmatpush1.msra.mxu0 0.0
    %774 = vmatprep.subr.mxu0 0.0
    %775 = vmatpush1.msra.mxu0 0.0
    %776 = vmatprep.subr.mxu0 0.0
    %777 = vmatpush1.msra.mxu0 0.0
    %778 = vmatprep.subr.mxu0 0.0
    %779 = vmatpush1.msra.mxu0 0.0
    %780 = vmatprep.subr.mxu0 0.0
    %781 = vmatpush1.msra.mxu0 0.0
    %782 = vmatprep.subr.mxu0 0.0
    %783 = vmatpush1.msra.mxu0 0.0
    %784 = vmatprep.subr.mxu0 0.0
    %785 = vmatpush1.msra.mxu0 0.0
    %786 = vmatprep.subr.mxu0 0.0
    %787 = vmatpush1.msra.mxu0 0.0
    %788 = vmatprep.subr.mxu0 0.0
    %789 = vmatpush1.msra.mxu0 0.0
    %790 = vmatprep.subr.mxu0 0.0
    %791 = vmatpush1.msra.mxu0 0.0
    %792 = vmatprep.subr.mxu0 0.0
    %793 = vmatpush1.msra.mxu0 0.0
    %794 = vmatprep.subr.mxu0 0.0
    %795 = vmatpush1.msra.mxu0 0.0
    %796 = vmatprep.subr.mxu0 0.0
    %797 = vmatpush1.msra.mxu0 0.0
    %798 = vmatprep.subr.mxu0 0.0
    %799 = vmatpush1.msra.mxu0 0.0
    %800 = vmatprep.subr.mxu0 0.0
    %801 = vmatpush1.msra.mxu0 0.0
    %802 = vmatprep.subr.mxu0 0.0
    %803 = vmatpush1.msra.mxu0 0.0
    %804 = vmatprep.mubr.f32.mxu0 0.0
    %805 = vmatmul.mubr.f32.gmra.mrb[0].mxu0 %v738
    %v806 = vpop.f32.mrb[0].mxu0
    %v807 = vadd.f32 0.0, %v806
    %v808 = vpop.f32.mrb[0].mxu0
    %809 = vdwg.mxu0
    %v810 = vtanh.pop %v807
    %812 = vrot.lane.b32.xlu0 %v727, 32
    %v813 = vpop.permute.xlu0 %812
    %v815 = vsel %vm159, %v810, %v813
    %v816 = vsel %vm161, %v815, %v157
    %v818 = vsel %vm163, %v816, 0
    %820 = vmatprep.subr.mxu0 0.0
    %821 = vmatpush1.msra.mxu0 %v20
    %822 = vmatprep.subr.mxu0 0.0
    %823 = vmatpush1.msra.mxu0 %v21
    %824 = vmatprep.subr.mxu0 0.0
    %825 = vmatpush1.msra.mxu0 %v22
    %826 = vmatprep.subr.mxu0 0.0
    %827 = vmatpush1.msra.mxu0 %v23
    %828 = vmatprep.subr.mxu0 0.0
    %829 = vmatpush1.msra.mxu0 %v24
    %830 = vmatprep.subr.mxu0 0.0
    %831 = vmatpush1.msra.mxu0 %v25
    %832 = vmatprep.subr.mxu0 0.0
    %833 = vmatpush1.msra.mxu0 %v26
    %834 = vmatprep.subr.mxu0 0.0
    %835 = vmatpush1.msra.mxu0 %v27
    %836 = vmatprep.subr.mxu0 0.0
    %837 = vmatpush1.msra.mxu0 %v28
    %838 = vmatprep.subr.mxu0 0.0
    %839 = vmatpush1.msra.mxu0 0.0
    %840 = vmatprep.subr.mxu0 0.0
    %841 = vmatpush1.msra.mxu0 0.0
    %842 = vmatprep.subr.mxu0 0.0
    %843 = vmatpush1.msra.mxu0 0.0
    %844 = vmatprep.subr.mxu0 0.0
    %845 = vmatpush1.msra.mxu0 0.0
    %846 = vmatprep.subr.mxu0 0.0
    %847 = vmatpush1.msra.mxu0 0.0
    %848 = vmatprep.subr.mxu0 0.0
    %849 = vmatpush1.msra.mxu0 0.0
    %850 = vmatprep.subr.mxu0 0.0
    %851 = vmatpush1.msra.mxu0 0.0
    %852 = vmatprep.subr.mxu0 0.0
    %853 = vmatpush1.msra.mxu0 0.0
    %854 = vmatprep.subr.mxu0 0.0
    %855 = vmatpush1.msra.mxu0 0.0
    %856 = vmatprep.subr.mxu0 0.0
    %857 = vmatpush1.msra.mxu0 0.0
    %858 = vmatprep.subr.mxu0 0.0
    %859 = vmatpush1.msra.mxu0 0.0
    %860 = vmatprep.subr.mxu0 0.0
    %861 = vmatpush1.msra.mxu0 0.0
    %862 = vmatprep.subr.mxu0 0.0
    %863 = vmatpush1.msra.mxu0 0.0
    %864 = vmatprep.subr.mxu0 0.0
    %865 = vmatpush1.msra.mxu0 0.0
    %866 = vmatprep.subr.mxu0 0.0
    %867 = vmatpush1.msra.mxu0 0.0
    %868 = vmatprep.subr.mxu0 0.0
    %869 = vmatpush1.msra.mxu0 0.0
    %870 = vmatprep.subr.mxu0 0.0
    %871 = vmatpush1.msra.mxu0 0.0
    %872 = vmatprep.subr.mxu0 0.0
    %873 = vmatpush1.msra.mxu0 0.0
    %874 = vmatprep.subr.mxu0 0.0
    %875 = vmatpush1.msra.mxu0 0.0
    %876 = vmatprep.subr.mxu0 0.0
    %877 = vmatpush1.msra.mxu0 0.0
    %878 = vmatprep.subr.mxu0 0.0
    %879 = vmatpush1.msra.mxu0 0.0
    %880 = vmatprep.subr.mxu0 0.0
    %881 = vmatpush1.msra.mxu0 0.0
    %882 = vmatprep.subr.mxu0 0.0
    %883 = vmatpush1.msra.mxu0 0.0
    %884 = vmatprep.mubr.f32.mxu0 0.0
    %885 = vmatmul.mubr.f32.gmra.mrb[0].mxu0 %v818
    %v886 = vpop.f32.mrb[0].mxu0
    %v887 = vadd.f32 0.0, %v886
    %v888 = vpop.f32.mrb[0].mxu0
    %889 = vdwg.mxu0
    %v890 = vtanh.pop %v887
    %891 = vrot.lane.b32.xlu0 %v67, 88
    %v892 = vpop.permute.xlu0 %891
    %895 = vrot.lane.b32.xlu0 %v810, 8
    %v896 = vpop.permute.xlu0 %895
    %v898 = vsel %vm77, %v892, %v896
    %v899 = vsel %vm79, %v898, %v75
    %v901 = vsel %vm81, %v899, 0
    %903 = vmatprep.subr.mxu0 0.0
    %904 = vmatpush1.msra.mxu0 %v14
    %905 = vmatprep.subr.mxu0 0.0
    %906 = vmatpush1.msra.mxu0 %v15
    %907 = vmatprep.subr.mxu0 0.0
    %908 = vmatpush1.msra.mxu0 %v16
    %909 = vmatprep.subr.mxu0 0.0
    %910 = vmatpush1.msra.mxu0 %v17
    %911 = vmatprep.subr.mxu0 0.0
    %912 = vmatpush1.msra.mxu0 %v18
    %913 = vmatprep.subr.mxu0 0.0
    %914 = vmatpush1.msra.mxu0 %v19
    %915 = vmatprep.subr.mxu0 0.0
    %916 = vmatpush1.msra.mxu0 0.0
    %917 = vmatprep.subr.mxu0 0.0
    %918 = vmatpush1.msra.mxu0 0.0
    %919 = vmatprep.subr.mxu0 0.0
    %920 = vmatpush1.msra.mxu0 0.0
    %921 = vmatprep.subr.mxu0 0.0
    %922 = vmatpush1.msra.mxu0 0.0
    %923 = vmatprep.subr.mxu0 0.0
    %924 = vmatpush1.msra.mxu0 0.0
    %925 = vmatprep.subr.mxu0 0.0
    %926 = vmatpush1.msra.mxu0 0.0
    %927 = vmatprep.subr.mxu0 0.0
    %928 = vmatpush1.msra.mxu0 0.0
    %929 = vmatprep.subr.mxu0 0.0
    %930 = vmatpush1.msra.mxu0 0.0
    %931 = vmatprep.subr.mxu0 0.0
    %932 = vmatpush1.msra.mxu0 0.0
    %933 = vmatprep.subr.mxu0 0.0
    %934 = vmatpush1.msra.mxu0 0.0
    %935 = vmatprep.subr.mxu0 0.0
    %936 = vmatpush1.msra.mxu0 0.0
    %937 = vmatprep.subr.mxu0 0.0
    %938 = vmatpush1.msra.mxu0 0.0
    %939 = vmatprep.subr.mxu0 0.0
    %940 = vmatpush1.msra.mxu0 0.0
    %941 = vmatprep.subr.mxu0 0.0
    %942 = vmatpush1.msra.mxu0 0.0
    %943 = vmatprep.subr.mxu0 0.0
    %944 = vmatpush1.msra.mxu0 0.0
    %945 = vmatprep.subr.mxu0 0.0
    %946 = vmatpush1.msra.mxu0 0.0
    %947 = vmatprep.subr.mxu0 0.0
    %948 = vmatpush1.msra.mxu0 0.0
    %949 = vmatprep.subr.mxu0 0.0
    %950 = vmatpush1.msra.mxu0 0.0
    %951 = vmatprep.subr.mxu0 0.0
    %952 = vmatpush1.msra.mxu0 0.0
    %953 = vmatprep.subr.mxu0 0.0
    %954 = vmatpush1.msra.mxu0 0.0
    %955 = vmatprep.subr.mxu0 0.0
    %956 = vmatpush1.msra.mxu0 0.0
    %957 = vmatprep.subr.mxu0 0.0
    %958 = vmatpush1.msra.mxu0 0.0
    %959 = vmatprep.subr.mxu0 0.0
    %960 = vmatpush1.msra.mxu0 0.0
    %961 = vmatprep.subr.mxu0 0.0
    %962 = vmatpush1.msra.mxu0 0.0
    %963 = vmatprep.subr.mxu0 0.0
    %964 = vmatpush1.msra.mxu0 0.0
    %965 = vmatprep.subr.mxu0 0.0
    %966 = vmatpush1.msra.mxu0 0.0
    %967 = vmatprep.mubr.f32.mxu0 0.0
    %968 = vmatmul.mubr.f32.gmra.mrb[0].mxu0 %v901
    %v969 = vpop.f32.mrb[0].mxu0
    %v970 = vadd.f32 0.0, %v969
    %v971 = vpop.f32.mrb[0].mxu0
    %972 = vdwg.mxu0
    %v973 = vtanh.pop %v970
    %975 = vrot.lane.b32.xlu0 %v890, 32
    %v976 = vpop.permute.xlu0 %975
    %v978 = vsel %vm159, %v973, %v976
    %v979 = vsel %vm161, %v978, %v157
    %v981 = vsel %vm163, %v979, 0
    %983 = vmatprep.subr.mxu0 0.0
    %984 = vmatpush1.msra.mxu0 %v20
    %985 = vmatprep.subr.mxu0 0.0
    %986 = vmatpush1.msra.mxu0 %v21
    %987 = vmatprep.subr.mxu0 0.0
    %988 = vmatpush1.msra.mxu0 %v22
    %989 = vmatprep.subr.mxu0 0.0
    %990 = vmatpush1.msra.mxu0 %v23
    %991 = vmatprep.subr.mxu0 0.0
    %992 = vmatpush1.msra.mxu0 %v24
    %993 = vmatprep.subr.mxu0 0.0
    %994 = vmatpush1.msra.mxu0 %v25
    %995 = vmatprep.subr.mxu0 0.0
    %996 = vmatpush1.msra.mxu0 %v26
    %997 = vmatprep.subr.mxu0 0.0
    %998 = vmatpush1.msra.mxu0 %v27
    %999 = vmatprep.subr.mxu0 0.0
    %1000 = vmatpush1.msra.mxu0 %v28
    %1001 = vmatprep.subr.mxu0 0.0
    %1002 = vmatpush1.msra.mxu0 0.0
    %1003 = vmatprep.subr.mxu0 0.0
    %1004 = vmatpush1.msra.mxu0 0.0
    %1005 = vmatprep.subr.mxu0 0.0
    %1006 = vmatpush1.msra.mxu0 0.0
    %1007 = vmatprep.subr.mxu0 0.0
    %1008 = vmatpush1.msra.mxu0 0.0
    %1009 = vmatprep.subr.mxu0 0.0
    %1010 = vmatpush1.msra.mxu0 0.0
    %1011 = vmatprep.subr.mxu0 0.0
    %1012 = vmatpush1.msra.mxu0 0.0
    %1013 = vmatprep.subr.mxu0 0.0
    %1014 = vmatpush1.msra.mxu0 0.0
    %1015 = vmatprep.subr.mxu0 0.0
    %1016 = vmatpush1.msra.mxu0 0.0
    %1017 = vmatprep.subr.mxu0 0.0
    %1018 = vmatpush1.msra.mxu0 0.0
    %1019 = vmatprep.subr.mxu0 0.0
    %1020 = vmatpush1.msra.mxu0 0.0
    %1021 = vmatprep.subr.mxu0 0.0
    %1022 = vmatpush1.msra.mxu0 0.0
    %1023 = vmatprep.subr.mxu0 0.0
    %1024 = vmatpush1.msra.mxu0 0.0
    %1025 = vmatprep.subr.mxu0 0.0
    %1026 = vmatpush1.msra.mxu0 0.0
    %1027 = vmatprep.subr.mxu0 0.0
    %1028 = vmatpush1.msra.mxu0 0.0
    %1029 = vmatprep.subr.mxu0 0.0
    %1030 = vmatpush1.msra.mxu0 0.0
    %1031 = vmatprep.subr.mxu0 0.0
    %1032 = vmatpush1.msra.mxu0 0.0
    %1033 = vmatprep.subr.mxu0 0.0
    %1034 = vmatpush1.msra.mxu0 0.0
    %1035 = vmatprep.subr.mxu0 0.0
    %1036 = vmatpush1.msra.mxu0 0.0
    %1037 = vmatprep.subr.mxu0 0.0
    %1038 = vmatpush1.msra.mxu0 0.0
    %1039 = vmatprep.subr.mxu0 0.0
    %1040 = vmatpush1.msra.mxu0 0.0
    %1041 = vmatprep.subr.mxu0 0.0
    %1042 = vmatpush1.msra.mxu0 0.0
    %1043 = vmatprep.subr.mxu0 0.0
    %1044 = vmatpush1.msra.mxu0 0.0
    %1045 = vmatprep.subr.mxu0 0.0
    %1046 = vmatpush1.msra.mxu0 0.0
    %1047 = vmatprep.mubr.f32.mxu0 0.0
    %1048 = vmatmul.mubr.f32.gmra.mrb[0].mxu0 %v981
    %v1049 = vpop.f32.mrb[0].mxu0
    %v1050 = vadd.f32 0.0, %v1049
    %v1051 = vpop.f32.mrb[0].mxu0
    %1052 = vdwg.mxu0
    %v1053 = vtanh.pop %v1050
    %1054 = vrot.lane.b32.xlu0 %v67, 80
    %v1055 = vpop.permute.xlu0 %1054
    %1058 = vrot.lane.b32.xlu0 %v973, 8
    %v1059 = vpop.permute.xlu0 %1058
    %v1061 = vsel %vm77, %v1055, %v1059
    %v1062 = vsel %vm79, %v1061, %v75
    %v1064 = vsel %vm81, %v1062, 0
    %1066 = vmatprep.subr.mxu0 0.0
    %1067 = vmatpush1.msra.mxu0 %v14
    %1068 = vmatprep.subr.mxu0 0.0
    %1069 = vmatpush1.msra.mxu0 %v15
    %1070 = vmatprep.subr.mxu0 0.0
    %1071 = vmatpush1.msra.mxu0 %v16
    %1072 = vmatprep.subr.mxu0 0.0
    %1073 = vmatpush1.msra.mxu0 %v17
    %1074 = vmatprep.subr.mxu0 0.0
    %1075 = vmatpush1.msra.mxu0 %v18
    %1076 = vmatprep.subr.mxu0 0.0
    %1077 = vmatpush1.msra.mxu0 %v19
    %1078 = vmatprep.subr.mxu0 0.0
    %1079 = vmatpush1.msra.mxu0 0.0
    %1080 = vmatprep.subr.mxu0 0.0
    %1081 = vmatpush1.msra.mxu0 0.0
    %1082 = vmatprep.subr.mxu0 0.0
    %1083 = vmatpush1.msra.mxu0 0.0
    %1084 = vmatprep.subr.mxu0 0.0
    %1085 = vmatpush1.msra.mxu0 0.0
    %1086 = vmatprep.subr.mxu0 0.0
    %1087 = vmatpush1.msra.mxu0 0.0
    %1088 = vmatprep.subr.mxu0 0.0
    %1089 = vmatpush1.msra.mxu0 0.0
    %1090 = vmatprep.subr.mxu0 0.0
    %1091 = vmatpush1.msra.mxu0 0.0
    %1092 = vmatprep.subr.mxu0 0.0
    %1093 = vmatpush1.msra.mxu0 0.0
    %1094 = vmatprep.subr.mxu0 0.0
    %1095 = vmatpush1.msra.mxu0 0.0
    %1096 = vmatprep.subr.mxu0 0.0
    %1097 = vmatpush1.msra.mxu0 0.0
    %1098 = vmatprep.subr.mxu0 0.0
    %1099 = vmatpush1.msra.mxu0 0.0
    %1100 = vmatprep.subr.mxu0 0.0
    %1101 = vmatpush1.msra.mxu0 0.0
    %1102 = vmatprep.subr.mxu0 0.0
    %1103 = vmatpush1.msra.mxu0 0.0
    %1104 = vmatprep.subr.mxu0 0.0
    %1105 = vmatpush1.msra.mxu0 0.0
    %1106 = vmatprep.subr.mxu0 0.0
    %1107 = vmatpush1.msra.mxu0 0.0
    %1108 = vmatprep.subr.mxu0 0.0
    %1109 = vmatpush1.msra.mxu0 0.0
    %1110 = vmatprep.subr.mxu0 0.0
    %1111 = vmatpush1.msra.mxu0 0.0
    %1112 = vmatprep.subr.mxu0 0.0
    %1113 = vmatpush1.msra.mxu0 0.0
    %1114 = vmatprep.subr.mxu0 0.0
    %1115 = vmatpush1.msra.mxu0 0.0
    %1116 = vmatprep.subr.mxu0 0.0
    %1117 = vmatpush1.msra.mxu0 0.0
    %1118 = vmatprep.subr.mxu0 0.0
    %1119 = vmatpush1.msra.mxu0 0.0
    %1120 = vmatprep.subr.mxu0 0.0
    %1121 = vmatpush1.msra.mxu0 0.0
    %1122 = vmatprep.subr.mxu0 0.0
    %1123 = vmatpush1.msra.mxu0 0.0
    %1124 = vmatprep.subr.mxu0 0.0
    %1125 = vmatpush1.msra.mxu0 0.0
    %1126 = vmatprep.subr.mxu0 0.0
    %1127 = vmatpush1.msra.mxu0 0.0
    %1128 = vmatprep.subr.mxu0 0.0
    %1129 = vmatpush1.msra.mxu0 0.0
    %1130 = vmatprep.mubr.f32.mxu0 0.0
    %1131 = vmatmul.mubr.f32.gmra.mrb[0].mxu0 %v1064
    %v1132 = vpop.f32.mrb[0].mxu0
    %v1133 = vadd.f32 0.0, %v1132
    %v1134 = vpop.f32.mrb[0].mxu0
    %1135 = vdwg.mxu0
    %v1136 = vtanh.pop %v1133
    %1138 = vrot.lane.b32.xlu0 %v1053, 32
    %v1139 = vpop.permute.xlu0 %1138
    %v1141 = vsel %vm159, %v1136, %v1139
    %v1142 = vsel %vm161, %v1141, %v157
    %v1144 = vsel %vm163, %v1142, 0
    %1146 = vmatprep.subr.mxu0 0.0
    %1147 = vmatpush1.msra.mxu0 %v20
    %1148 = vmatprep.subr.mxu0 0.0
    %1149 = vmatpush1.msra.mxu0 %v21
    %1150 = vmatprep.subr.mxu0 0.0
    %1151 = vmatpush1.msra.mxu0 %v22
    %1152 = vmatprep.subr.mxu0 0.0
    %1153 = vmatpush1.msra.mxu0 %v23
    %1154 = vmatprep.subr.mxu0 0.0
    %1155 = vmatpush1.msra.mxu0 %v24
    %1156 = vmatprep.subr.mxu0 0.0
    %1157 = vmatpush1.msra.mxu0 %v25
    %1158 = vmatprep.subr.mxu0 0.0
    %1159 = vmatpush1.msra.mxu0 %v26
    %1160 = vmatprep.subr.mxu0 0.0
    %1161 = vmatpush1.msra.mxu0 %v27
    %1162 = vmatprep.subr.mxu0 0.0
    %1163 = vmatpush1.msra.mxu0 %v28
    %1164 = vmatprep.subr.mxu0 0.0
    %1165 = vmatpush1.msra.mxu0 0.0
    %1166 = vmatprep.subr.mxu0 0.0
    %1167 = vmatpush1.msra.mxu0 0.0
    %1168 = vmatprep.subr.mxu0 0.0
    %1169 = vmatpush1.msra.mxu0 0.0
    %1170 = vmatprep.subr.mxu0 0.0
    %1171 = vmatpush1.msra.mxu0 0.0
    %1172 = vmatprep.subr.mxu0 0.0
    %1173 = vmatpush1.msra.mxu0 0.0
    %1174 = vmatprep.subr.mxu0 0.0
    %1175 = vmatpush1.msra.mxu0 0.0
    %1176 = vmatprep.subr.mxu0 0.0
    %1177 = vmatpush1.msra.mxu0 0.0
    %1178 = vmatprep.subr.mxu0 0.0
    %1179 = vmatpush1.msra.mxu0 0.0
    %1180 = vmatprep.subr.mxu0 0.0
    %1181 = vmatpush1.msra.mxu0 0.0
    %1182 = vmatprep.subr.mxu0 0.0
    %1183 = vmatpush1.msra.mxu0 0.0
    %1184 = vmatprep.subr.mxu0 0.0
    %1185 = vmatpush1.msra.mxu0 0.0
    %1186 = vmatprep.subr.mxu0 0.0
    %1187 = vmatpush1.msra.mxu0 0.0
    %1188 = vmatprep.subr.mxu0 0.0
    %1189 = vmatpush1.msra.mxu0 0.0
    %1190 = vmatprep.subr.mxu0 0.0
    %1191 = vmatpush1.msra.mxu0 0.0
    %1192 = vmatprep.subr.mxu0 0.0
    %1193 = vmatpush1.msra.mxu0 0.0
    %1194 = vmatprep.subr.mxu0 0.0
    %1195 = vmatpush1.msra.mxu0 0.0
    %1196 = vmatprep.subr.mxu0 0.0
    %1197 = vmatpush1.msra.mxu0 0.0
    %1198 = vmatprep.subr.mxu0 0.0
    %1199 = vmatpush1.msra.mxu0 0.0
    %1200 = vmatprep.subr.mxu0 0.0
    %1201 = vmatpush1.msra.mxu0 0.0
    %1202 = vmatprep.subr.mxu0 0.0
    %1203 = vmatpush1.msra.mxu0 0.0
    %1204 = vmatprep.subr.mxu0 0.0
    %1205 = vmatpush1.msra.mxu0 0.0
    %1206 = vmatprep.subr.mxu0 0.0
    %1207 = vmatpush1.msra.mxu0 0.0
    %1208 = vmatprep.subr.mxu0 0.0
    %1209 = vmatpush1.msra.mxu0 0.0
    %1210 = vmatprep.mubr.f32.mxu0 0.0
    %1211 = vmatmul.mubr.f32.gmra.mrb[0].mxu0 %v1144
    %v1212 = vpop.f32.mrb[0].mxu0
    %v1213 = vadd.f32 0.0, %v1212
    %v1214 = vpop.f32.mrb[0].mxu0
    %1215 = vdwg.mxu0
    %v1216 = vtanh.pop %v1213
    %1217 = vrot.lane.b32.xlu0 %v67, 72
    %v1218 = vpop.permute.xlu0 %1217
    %1221 = vrot.lane.b32.xlu0 %v1136, 8
    %v1222 = vpop.permute.xlu0 %1221
    %v1224 = vsel %vm77, %v1218, %v1222
    %v1225 = vsel %vm79, %v1224, %v75
    %v1227 = vsel %vm81, %v1225, 0
    %1229 = vmatprep.subr.mxu0 0.0
    %1230 = vmatpush1.msra.mxu0 %v14
    %1231 = vmatprep.subr.mxu0 0.0
    %1232 = vmatpush1.msra.mxu0 %v15
    %1233 = vmatprep.subr.mxu0 0.0
    %1234 = vmatpush1.msra.mxu0 %v16
    %1235 = vmatprep.subr.mxu0 0.0
    %1236 = vmatpush1.msra.mxu0 %v17
    %1237 = vmatprep.subr.mxu0 0.0
    %1238 = vmatpush1.msra.mxu0 %v18
    %1239 = vmatprep.subr.mxu0 0.0
    %1240 = vmatpush1.msra.mxu0 %v19
    %1241 = vmatprep.subr.mxu0 0.0
    %1242 = vmatpush1.msra.mxu0 0.0
    %1243 = vmatprep.subr.mxu0 0.0
    %1244 = vmatpush1.msra.mxu0 0.0
    %1245 = vmatprep.subr.mxu0 0.0
    %1246 = vmatpush1.msra.mxu0 0.0
    %1247 = vmatprep.subr.mxu0 0.0
    %1248 = vmatpush1.msra.mxu0 0.0
    %1249 = vmatprep.subr.mxu0 0.0
    %1250 = vmatpush1.msra.mxu0 0.0
    %1251 = vmatprep.subr.mxu0 0.0
    %1252 = vmatpush1.msra.mxu0 0.0
    %1253 = vmatprep.subr.mxu0 0.0
    %1254 = vmatpush1.msra.mxu0 0.0
    %1255 = vmatprep.subr.mxu0 0.0
    %1256 = vmatpush1.msra.mxu0 0.0
    %1257 = vmatprep.subr.mxu0 0.0
    %1258 = vmatpush1.msra.mxu0 0.0
    %1259 = vmatprep.subr.mxu0 0.0
    %1260 = vmatpush1.msra.mxu0 0.0
    %1261 = vmatprep.subr.mxu0 0.0
    %1262 = vmatpush1.msra.mxu0 0.0
    %1263 = vmatprep.subr.mxu0 0.0
    %1264 = vmatpush1.msra.mxu0 0.0
    %1265 = vmatprep.subr.mxu0 0.0
    %1266 = vmatpush1.msra.mxu0 0.0
    %1267 = vmatprep.subr.mxu0 0.0
    %1268 = vmatpush1.msra.mxu0 0.0
    %1269 = vmatprep.subr.mxu0 0.0
    %1270 = vmatpush1.msra.mxu0 0.0
    %1271 = vmatprep.subr.mxu0 0.0
    %1272 = vmatpush1.msra.mxu0 0.0
    %1273 = vmatprep.subr.mxu0 0.0
    %1274 = vmatpush1.msra.mxu0 0.0
    %1275 = vmatprep.subr.mxu0 0.0
    %1276 = vmatpush1.msra.mxu0 0.0
    %1277 = vmatprep.subr.mxu0 0.0
    %1278 = vmatpush1.msra.mxu0 0.0
    %1279 = vmatprep.subr.mxu0 0.0
    %1280 = vmatpush1.msra.mxu0 0.0
    %1281 = vmatprep.subr.mxu0 0.0
    %1282 = vmatpush1.msra.mxu0 0.0
    %1283 = vmatprep.subr.mxu0 0.0
    %1284 = vmatpush1.msra.mxu0 0.0
    %1285 = vmatprep.subr.mxu0 0.0
    %1286 = vmatpush1.msra.mxu0 0.0
    %1287 = vmatprep.subr.mxu0 0.0
    %1288 = vmatpush1.msra.mxu0 0.0
    %1289 = vmatprep.subr.mxu0 0.0
    %1290 = vmatpush1.msra.mxu0 0.0
    %1291 = vmatprep.subr.mxu0 0.0
    %1292 = vmatpush1.msra.mxu0 0.0
    %1293 = vmatprep.mubr.f32.mxu0 0.0
    %1294 = vmatmul.mubr.f32.gmra.mrb[0].mxu0 %v1227
    %v1295 = vpop.f32.mrb[0].mxu0
    %v1296 = vadd.f32 0.0, %v1295
    %v1297 = vpop.f32.mrb[0].mxu0
    %1298 = vdwg.mxu0
    %v1299 = vtanh.pop %v1296
    %1301 = vrot.lane.b32.xlu0 %v1216, 32
    %v1302 = vpop.permute.xlu0 %1301
    %v1304 = vsel %vm159, %v1299, %v1302
    %v1305 = vsel %vm161, %v1304, %v157
    %v1307 = vsel %vm163, %v1305, 0
    %1309 = vmatprep.subr.mxu0 0.0
    %1310 = vmatpush1.msra.mxu0 %v20
    %1311 = vmatprep.subr.mxu0 0.0
    %1312 = vmatpush1.msra.mxu0 %v21
    %1313 = vmatprep.subr.mxu0 0.0
    %1314 = vmatpush1.msra.mxu0 %v22
    %1315 = vmatprep.subr.mxu0 0.0
    %1316 = vmatpush1.msra.mxu0 %v23
    %1317 = vmatprep.subr.mxu0 0.0
    %1318 = vmatpush1.msra.mxu0 %v24
    %1319 = vmatprep.subr.mxu0 0.0
    %1320 = vmatpush1.msra.mxu0 %v25
    %1321 = vmatprep.subr.mxu0 0.0
    %1322 = vmatpush1.msra.mxu0 %v26
    %1323 = vmatprep.subr.mxu0 0.0
    %1324 = vmatpush1.msra.mxu0 %v27
    %1325 = vmatprep.subr.mxu0 0.0
    %1326 = vmatpush1.msra.mxu0 %v28
    %1327 = vmatprep.subr.mxu0 0.0
    %1328 = vmatpush1.msra.mxu0 0.0
    %1329 = vmatprep.subr.mxu0 0.0
    %1330 = vmatpush1.msra.mxu0 0.0
    %1331 = vmatprep.subr.mxu0 0.0
    %1332 = vmatpush1.msra.mxu0 0.0
    %1333 = vmatprep.subr.mxu0 0.0
    %1334 = vmatpush1.msra.mxu0 0.0
    %1335 = vmatprep.subr.mxu0 0.0
    %1336 = vmatpush1.msra.mxu0 0.0
    %1337 = vmatprep.subr.mxu0 0.0
    %1338 = vmatpush1.msra.mxu0 0.0
    %1339 = vmatprep.subr.mxu0 0.0
    %1340 = vmatpush1.msra.mxu0 0.0
    %1341 = vmatprep.subr.mxu0 0.0
    %1342 = vmatpush1.msra.mxu0 0.0
    %1343 = vmatprep.subr.mxu0 0.0
    %1344 = vmatpush1.msra.mxu0 0.0
    %1345 = vmatprep.subr.mxu0 0.0
    %1346 = vmatpush1.msra.mxu0 0.0
    %1347 = vmatprep.subr.mxu0 0.0
    %1348 = vmatpush1.msra.mxu0 0.0
    %1349 = vmatprep.subr.mxu0 0.0
    %1350 = vmatpush1.msra.mxu0 0.0
    %1351 = vmatprep.subr.mxu0 0.0
    %1352 = vmatpush1.msra.mxu0 0.0
    %1353 = vmatprep.subr.mxu0 0.0
    %1354 = vmatpush1.msra.mxu0 0.0
    %1355 = vmatprep.subr.mxu0 0.0
    %1356 = vmatpush1.msra.mxu0 0.0
    %1357 = vmatprep.subr.mxu0 0.0
    %1358 = vmatpush1.msra.mxu0 0.0
    %1359 = vmatprep.subr.mxu0 0.0
    %1360 = vmatpush1.msra.mxu0 0.0
    %1361 = vmatprep.subr.mxu0 0.0
    %1362 = vmatpush1.msra.mxu0 0.0
    %1363 = vmatprep.subr.mxu0 0.0
    %1364 = vmatpush1.msra.mxu0 0.0
    %1365 = vmatprep.subr.mxu0 0.0
    %1366 = vmatpush1.msra.mxu0 0.0
    %1367 = vmatprep.subr.mxu0 0.0
    %1368 = vmatpush1.msra.mxu0 0.0
    %1369 = vmatprep.subr.mxu0 0.0
    %1370 = vmatpush1.msra.mxu0 0.0
    %1371 = vmatprep.subr.mxu0 0.0
    %1372 = vmatpush1.msra.mxu0 0.0
    %1373 = vmatprep.mubr.f32.mxu0 0.0
    %1374 = vmatmul.mubr.f32.gmra.mrb[0].mxu0 %v1307
    %v1375 = vpop.f32.mrb[0].mxu0
    %v1376 = vadd.f32 0.0, %v1375
    %v1377 = vpop.f32.mrb[0].mxu0
    %1378 = vdwg.mxu0
    %v1379 = vtanh.pop %v1376
    %v1381 = vsel %vm159, %v1299, 0
    %1383 = vmatprep.subr.mxu0 0.0
    %1384 = vmatpush1.msra.mxu0 %v29
    %1385 = vmatprep.subr.mxu0 0.0
    %1386 = vmatpush1.msra.mxu0 %v30
    %1387 = vmatprep.subr.mxu0 0.0
    %1388 = vmatpush1.msra.mxu0 %v31
    %1389 = vmatprep.subr.mxu0 0.0
    %1390 = vmatpush1.msra.mxu0 %v32
    %1391 = vmatprep.subr.mxu0 0.0
    %1392 = vmatpush1.msra.mxu0 0.0
    %1393 = vmatprep.subr.mxu0 0.0
    %1394 = vmatpush1.msra.mxu0 0.0
    %1395 = vmatprep.subr.mxu0 0.0
    %1396 = vmatpush1.msra.mxu0 0.0
    %1397 = vmatprep.subr.mxu0 0.0
    %1398 = vmatpush1.msra.mxu0 0.0
    %1399 = vmatprep.subr.mxu0 0.0
    %1400 = vmatpush1.msra.mxu0 0.0
    %1401 = vmatprep.subr.mxu0 0.0
    %1402 = vmatpush1.msra.mxu0 0.0
    %1403 = vmatprep.subr.mxu0 0.0
    %1404 = vmatpush1.msra.mxu0 0.0
    %1405 = vmatprep.subr.mxu0 0.0
    %1406 = vmatpush1.msra.mxu0 0.0
    %1407 = vmatprep.subr.mxu0 0.0
    %1408 = vmatpush1.msra.mxu0 0.0
    %1409 = vmatprep.subr.mxu0 0.0
    %1410 = vmatpush1.msra.mxu0 0.0
    %1411 = vmatprep.subr.mxu0 0.0
    %1412 = vmatpush1.msra.mxu0 0.0
    %1413 = vmatprep.subr.mxu0 0.0
    %1414 = vmatpush1.msra.mxu0 0.0
    %1415 = vmatprep.subr.mxu0 0.0
    %1416 = vmatpush1.msra.mxu0 0.0
    %1417 = vmatprep.subr.mxu0 0.0
    %1418 = vmatpush1.msra.mxu0 0.0
    %1419 = vmatprep.subr.mxu0 0.0
    %1420 = vmatpush1.msra.mxu0 0.0
    %1421 = vmatprep.subr.mxu0 0.0
    %1422 = vmatpush1.msra.mxu0 0.0
    %1423 = vmatprep.subr.mxu0 0.0
    %1424 = vmatpush1.msra.mxu0 0.0
    %1425 = vmatprep.subr.mxu0 0.0
    %1426 = vmatpush1.msra.mxu0 0.0
    %1427 = vmatprep.subr.mxu0 0.0
    %1428 = vmatpush1.msra.mxu0 0.0
    %1429 = vmatprep.subr.mxu0 0.0
    %1430 = vmatpush1.msra.mxu0 0.0
    %1431 = vmatprep.subr.mxu0 0.0
    %1432 = vmatpush1.msra.mxu0 0.0
    %1433 = vmatprep.subr.mxu0 0.0
    %1434 = vmatpush1.msra.mxu0 0.0
    %1435 = vmatprep.subr.mxu0 0.0
    %1436 = vmatpush1.msra.mxu0 0.0
    %1437 = vmatprep.subr.mxu0 0.0
    %1438 = vmatpush1.msra.mxu0 0.0
    %1439 = vmatprep.subr.mxu0 0.0
    %1440 = vmatpush1.msra.mxu0 0.0
    %1441 = vmatprep.subr.mxu0 0.0
    %1442 = vmatpush1.msra.mxu0 0.0
    %1443 = vmatprep.subr.mxu0 0.0
    %1444 = vmatpush1.msra.mxu0 0.0
    %1445 = vmatprep.subr.mxu0 0.0
    %1446 = vmatpush1.msra.mxu0 0.0
    %1447 = vmatprep.mubr.f32.mxu0 0.0
    %1448 = vmatmul.mubr.f32.gmra.mrb[0].mxu0 %v1381
    %v1449 = vpop.f32.mrb[0].mxu0
    %v1450 = vadd.f32 %v33, %v1449
    %v1451 = vpop.f32.mrb[0].mxu0
    %1452 = vdwg.mxu0
    %vm1453 = vcmask 130048
    %1454 = vst.msk [vmem:[#allocation2] sm:$0xff] %vm1453, %v1450
    %1455 = vrot.lane.b32.xlu0 %v564, 64
    %v1456 = vpop.permute.xlu0 %1455
    %1458 = vrot.lane.b32.xlu0 %v727, 96
    %v1459 = vpop.permute.xlu0 %1458
    %1461 = vrot.lane.b32.xlu0 %v1216, 64
    %v1462 = vpop.permute.xlu0 %1461
    %1465 = vrot.lane.b32.xlu0 %v1379, 96
    %v1466 = vpop.permute.xlu0 %1465
    %v1468 = vsel %vm159, %v237, %v487
    %v1469 = vsel %vm161, %v1468, %v1456
    %vm1470 = vcmask 785408
    %v1471 = vsel %vm1470, %v1469, %v1459
    %v1472 = vsel %vm159, %v890, %v1139
    %v1473 = vsel %vm161, %v1472, %v1462
    %v1474 = vsel %vm1470, %v1473, %v1466
    %1475 = vmatprep.subr.mxu0 0.0
    %1476 = vmatpush1.msra.mxu0 %v34
    %1477 = vmatprep.subr.mxu0 0.0
    %1478 = vmatpush1.msra.mxu0 %v35
    %1479 = vmatprep.subr.mxu0 0.0
    %1480 = vmatpush1.msra.mxu0 %v36
    %1481 = vmatprep.subr.mxu0 0.0
    %1482 = vmatpush1.msra.mxu0 %v37
    %1483 = vmatprep.subr.mxu0 0.0
    %1484 = vmatpush1.msra.mxu0 %v38
    %1485 = vmatprep.subr.mxu0 0.0
    %1486 = vmatpush1.msra.mxu0 %v39
    %1487 = vmatprep.subr.mxu0 0.0
    %1488 = vmatpush1.msra.mxu0 %v40
    %1489 = vmatprep.subr.mxu0 0.0
    %1490 = vmatpush1.msra.mxu0 %v41
    %1491 = vmatprep.subr.mxu0 0.0
    %1492 = vmatpush1.msra.mxu0 %v42
    %1493 = vmatprep.subr.mxu0 0.0
    %1494 = vmatpush1.msra.mxu0 %v43
    %1495 = vmatprep.subr.mxu0 0.0
    %1496 = vmatpush1.msra.mxu0 %v44
    %1497 = vmatprep.subr.mxu0 0.0
    %1498 = vmatpush1.msra.mxu0 %v45
    %1499 = vmatprep.subr.mxu0 0.0
    %1500 = vmatpush1.msra.mxu0 %v46
    %1501 = vmatprep.subr.mxu0 0.0
    %1502 = vmatpush1.msra.mxu0 %v47
    %1503 = vmatprep.subr.mxu0 0.0
    %1504 = vmatpush1.msra.mxu0 %v48
    %1505 = vmatprep.subr.mxu0 0.0
    %1506 = vmatpush1.msra.mxu0 %v49
    %1507 = vmatprep.subr.mxu0 0.0
    %1508 = vmatpush1.msra.mxu0 %v50
    %1509 = vmatprep.subr.mxu0 0.0
    %1510 = vmatpush1.msra.mxu0 %v51
    %1511 = vmatprep.subr.mxu0 0.0
    %1512 = vmatpush1.msra.mxu0 %v52
    %1513 = vmatprep.subr.mxu0 0.0
    %1514 = vmatpush1.msra.mxu0 %v53
    %1515 = vmatprep.subr.mxu0 0.0
    %1516 = vmatpush1.msra.mxu0 %v54
    %1517 = vmatprep.subr.mxu0 0.0
    %1518 = vmatpush1.msra.mxu0 %v55
    %1519 = vmatprep.subr.mxu0 0.0
    %1520 = vmatpush1.msra.mxu0 %v56
    %1521 = vmatprep.subr.mxu0 0.0
    %1522 = vmatpush1.msra.mxu0 %v57
    %1523 = vmatprep.subr.mxu0 0.0
    %1524 = vmatpush1.msra.mxu0 %v58
    %1525 = vmatprep.subr.mxu0 0.0
    %1526 = vmatpush1.msra.mxu0 %v59
    %1527 = vmatprep.subr.mxu0 0.0
    %1528 = vmatpush1.msra.mxu0 %v60
    %1529 = vmatprep.subr.mxu0 0.0
    %1530 = vmatpush1.msra.mxu0 %v61
    %1531 = vmatprep.subr.mxu0 0.0
    %1532 = vmatpush1.msra.mxu0 %v62
    %1533 = vmatprep.subr.mxu0 0.0
    %1534 = vmatpush1.msra.mxu0 %v63
    %1535 = vmatprep.subr.mxu0 0.0
    %1536 = vmatpush1.msra.mxu0 %v64
    %1537 = vmatprep.subr.mxu0 0.0
    %1538 = vmatpush1.msra.mxu0 %v65
    %1539 = vmatprep.mubr.f32.mxu0 %v1474
    %1540 = vmatmul.mubr.f32.gmra.mrb[0].mxu0 %v1471
    %v1541 = vpop.f32.mrb[0].mxu0
    %v1542 = vadd.f32 %v66, %v1541
    %v1543 = vpop.f32.mrb[0].mxu0
    %1544 = vdwg.mxu0
    %1545 = vst.msk [vmem:[%s2] sm:$0xff] %vm161, %v1542
    // Predicated region
    $region10: #{acled_forward.1} parent=1 // pred_check
      _
    $region11: #{acled_forward.1} parent=1 // pred_check_branch
      %1547 = sbr.rel (0) target = $region13
    $region12: #{acled_forward.1} parent=1 // pred_region
      _
    $region13: #{acled_forward.1} parent=1 // pred_fallthru
      _
    // Predicated region
    $region14: #{acled_forward.1} parent=1 // pred_check
      _
    $region15: #{acled_forward.1} parent=1 // pred_check_branch
      %1549 = sbr.rel (0) target = $region17
    $region16: #{acled_forward.1} parent=1 // pred_region
      %s1551 = ssub.s32 128, 128
      %1552 = vsyncadd [#allocation3], %s1551
      %s1554 = sshll.u32 [#allocation2], 4
      %s1555 = int_to_ptr.vmem [resolvable:$true] %s1554
      %1557 = dma.vmem_to_hbm [thread:$0]  %s1555, 128, %s3, [#allocation3]
    $region17: #{acled_forward.1} parent=1 // pred_fallthru
      _
    // Predicated region
    $region18: #{acled_forward.1} parent=1 // pred_check
      _
    $region19: #{acled_forward.1} parent=1 // pred_check_branch
      %1559 = sbr.rel (0) target = $region21
    $region20: #{acled_forward.1} parent=1 // pred_region
      _
    $region21: #{acled_forward.1} parent=1 // pred_fallthru
      _
    // Predicated region
    $region22: #{acled_forward.1} parent=1 // pred_check
      _
    $region23: #{acled_forward.1} parent=1 // pred_check_branch
      %1561 = sbr.rel (0) target = $region25
    $region24: #{acled_forward.1} parent=1 // pred_region
      %1562 = dma.done [#allocation3], 128
    $region25: #{acled_forward.1} parent=1 // pred_fallthru
      _
    %1563 = vsyncpa [#allocation3], 1

</llo_original>
